<compile_context>
chip_gen: v6e
topology: v6e:2x2x1
jax: 0.10.0
libtpu: 0.0.40
codegen_flags: <defaults>
</compile_context>

<pallas_src>
import functools

import jax
import jax.numpy as jnp
from jax import lax
from jax.experimental import pallas as pl
from jax.experimental.pallas import tpu as pltpu


def _round_up(x, m):
    return (x + m - 1) // m * m


def _pick_tile(bp, cap=1024):
    """Largest multiple of 128 that divides `bp` and is <= the effective cap.

    The cap is clamped to 1024 (fits the 32 MiB scoped-VMEM default on v7x; do
    NOT grow to 2048 there) and, when bp >= 256, additionally to bp // 2 so the
    'parallel' row grid axis has at least 2 tiles (both v7x TensorCores engage).
    """
    cap = min(cap, 1024)
    if bp >= 256:
        cap = min(cap, bp // 2)
    best = 128
    t = 128
    while t <= cap:
        if bp % t == 0:
            best = t
        t += 128
    return best


def _multitask_kernel(ue_ref, ier_ref, iec_ref, rb_ref,
                      w1a_ref, w1b_ref, w1c_ref, b1_ref,
                      w2_ref, b2_ref, w3_ref, b3_ref,
                      pred_ref, score_ref):
    # Tile shapes: ue/ier (tm, D) bf16, iec (tn, D) bf16, rb (tm, 1) f32,
    # pred (tm, tn) pred_dtype, score (tm, 128) f32.
    u = ue_ref[...]            # (tm, D) bf16  -- user embeddings (rows)
    ic = iec_ref[...]          # (tn, D) bf16  -- item embeddings (pred columns)

    # predictions[a, b] = <u_a, i_b> + user_bias[a] + item_bias[a]
    # (both biases broadcast along the column axis, exactly as the PyTorch
    #  reference does with two (B, 1) tensors; rb = user_bias + item_bias).
    # NT dot_general: contract the D axis of both operands -> no transpose.
    acc = lax.dot_general(u, ic, (((1,), (1,)), ((), ())),
                          preferred_element_type=jnp.float32)
    pred_ref[...] = (acc + rb_ref[...]).astype(pred_ref.dtype)

    # The per-row MLP score does not depend on the column tile j; compute it
    # once per row tile.
    @pl.when(pl.program_id(1) == 0)
    def _():
        ir = ier_ref[...]                      # (tm, D) bf16 -- item embeds (rows)
        ui = u * ir                            # elementwise (bf16; upcast on v5e)
        # final_embed = concat([u, ir, u*ir]) @ W1 + b1, done as a row-split of
        # W1 (mathematically identical, avoids a lane concat of narrow tiles).
        pre1 = (jnp.dot(u,  w1a_ref[...], preferred_element_type=jnp.float32)
                + jnp.dot(ir, w1b_ref[...], preferred_element_type=jnp.float32)
                + jnp.dot(ui, w1c_ref[...], preferred_element_type=jnp.float32)
                + b1_ref[...])
        h1 = jnp.maximum(pre1, 0.0).astype(jnp.bfloat16)          # ReLU -> bf16
        h2 = jnp.maximum(
            jnp.dot(h1, w2_ref[...], preferred_element_type=jnp.float32)
            + b2_ref[...], 0.0).astype(jnp.bfloat16)              # ReLU
        # w3/b3 are zero-padded to a fixed 128 output lanes -> lane-dense store;
        # only column 0 is the real score.
        score_ref[...] = (jnp.dot(h2, w3_ref[...],
                                  preferred_element_type=jnp.float32)
                          + b3_ref[...])


def prepare_params(params):
    """Host-side parameter prep: split w1, pad H->mult of 128, cast MXU operands to bf16."""
    (user_table, user_bias_table, item_table, item_bias_table,
     w1, b1, w2, b2, w3, b3) = params
    D = user_table.shape[1]
    H = w1.shape[1]
    Hp = max(128, _round_up(H, 128))        # lane-dense hidden width

    def pad2(x, r, c):
        return jnp.pad(x, ((0, r - x.shape[0]), (0, c - x.shape[1])))

    w1a = pad2(w1[0 * D:1 * D], D, Hp).astype(jnp.bfloat16)
    w1b = pad2(w1[1 * D:2 * D], D, Hp).astype(jnp.bfloat16)
    w1c = pad2(w1[2 * D:3 * D], D, Hp).astype(jnp.bfloat16)
    b1p = pad2(b1, 1, Hp).astype(jnp.float32)
    w2p = pad2(w2, Hp, Hp).astype(jnp.bfloat16)
    b2p = pad2(b2, 1, Hp).astype(jnp.float32)
    # Score slab width is a FIXED 128 lanes (not Hp) -- one real output column.
    w3p = pad2(w3, Hp, 128).astype(jnp.bfloat16)   # (H, 1) -> (Hp, 128), col 0 real
    b3p = pad2(b3, 1, 128).astype(jnp.float32)

    return (user_table.astype(jnp.bfloat16), user_bias_table.astype(jnp.float32),
            item_table.astype(jnp.bfloat16), item_bias_table.astype(jnp.float32),
            w1a, w1b, w1c, b1p, w2p, b2p, w3p, b3p)


def multitask_forward(user_ids, item_ids, prepared, *, tile=1024,
                      pred_dtype=jnp.bfloat16):
    """Forward pass of MultiTaskNet (embedding_sharing=True).

    `tile` is the upper bound on the pred tile edge (default 1024: ~7 MiB of
    VMEM with bf16 predictions, safely within the 32 MiB scoped-VMEM default on
    v5e/v6e/v7x).  The actual tile is the largest multiple of 128 that divides
    the 128-padded batch, additionally capped at Bp//2 when Bp >= 256 so both
    v7x TensorCores get row tiles.  `pred_dtype` controls the prediction-matrix
    output dtype; bf16 halves the dominant HBM writeback (pass jnp.float32 if
    downstream consumers need full precision).
    """
    (user_table, user_bias_table, item_table, item_bias_table,
     w1a, w1b, w1c, b1, w2, b2, w3, b3) = prepared
    B = user_ids.shape[0]
    D = user_table.shape[1]
    Hp = w2.shape[1]

    # Embedding gathers (plain-JAX glue).
    # TODO(synk): fuse the gather into the kernel (scalar-prefetched ids +
    # per-row DMA from HBM via memory_space=pl.ANY) for the small-B,
    # launch-overhead-dominated regime; kept as glue since general-size tables
    # don't fit VMEM and the gather traffic is noise vs. the B^2 pred writeback.
    ue = user_table[user_ids]                                    # (B, D) bf16
    ie = item_table[item_ids]                                    # (B, D) bf16
    rb = (user_bias_table[user_ids]
          + item_bias_table[item_ids]).astype(jnp.float32)       # (B, 1)

    # Pad batch only to the lane width (128), then pick a dividing tile.
    Bp = _round_up(B, 128)
    T = _pick_tile(Bp, tile)
    if Bp != B:
        ue = jnp.pad(ue, ((0, Bp - B), (0, 0)))
        ie = jnp.pad(ie, ((0, Bp - B), (0, 0)))
        rb = jnp.pad(rb, ((0, Bp - B), (0, 0)))

    grid = (Bp // T, Bp // T)
    const = lambda i, j: (0, 0)

    pred, score = pl.pallas_call(
        _multitask_kernel,
        out_shape=(jax.ShapeDtypeStruct((Bp, Bp), pred_dtype),
                   jax.ShapeDtypeStruct((Bp, 128), jnp.float32)),
        grid=grid,
        in_specs=[
            pl.BlockSpec((T, D), lambda i, j: (i, 0)),     # user embeds (rows)
            pl.BlockSpec((T, D), lambda i, j: (i, 0)),     # item embeds (rows, MLP)
            pl.BlockSpec((T, D), lambda i, j: (j, 0)),     # item embeds (pred cols)
            pl.BlockSpec((T, 1), lambda i, j: (i, 0)),     # row bias (ub + ib)
            # Constant-index weight/bias blocks stay resident in VMEM (never
            # re-DMA'd); single-buffering them is unnecessary at this footprint.
            pl.BlockSpec((D, Hp), const),                  # w1a
            pl.BlockSpec((D, Hp), const),                  # w1b
            pl.BlockSpec((D, Hp), const),                  # w1c
            pl.BlockSpec((1, Hp), const),                  # b1
            pl.BlockSpec((Hp, Hp), const),                 # w2
            pl.BlockSpec((1, Hp), const),                  # b2
            pl.BlockSpec((Hp, 128), const),                # w3 (padded, 128 lanes)
            pl.BlockSpec((1, 128), const),                 # b3 (padded, 128 lanes)
        ],
        out_specs=(pl.BlockSpec((T, T), lambda i, j: (i, j)),
                   pl.BlockSpec((T, 128), lambda i, j: (i, 0))),
        compiler_params=pltpu.CompilerParams(
            dimension_semantics=("parallel", "arbitrary"),
            vmem_limit_bytes=32 * 1024 * 1024),
    )(ue, ie, ie, rb, w1a, w1b, w1c, b1, w2, b2, w3, b3)

    # TODO(synk): the reference PyTorch forward raises ValueError because
    # predictions is (B, B); we return the computed values (score squeezed to
    # (batch,)) instead of raising.
    return pred[:B, :B], score[:B, 0]


def _linear_params(key, fan_in, fan_out):
    """Deterministic torch.nn.Linear-style init: U(-1/sqrt(fan_in), 1/sqrt(fan_in))."""
    kw, kb = jax.random.split(key)
    bound = 1.0 / float(fan_in) ** 0.5
    w = jax.random.uniform(kw, (fan_in, fan_out), jnp.float32, -bound, bound)
    b = jax.random.uniform(kb, (1, fan_out), jnp.float32, -bound, bound)
    return w, b


if __name__ == "__main__":
    num_users, num_items = 16, 24
    batch, embedding_dim = 8, 32
    layer_sizes = [3 * embedding_dim, 64]   # [96, 64]

    key = jax.random.PRNGKey(0)
    k_ut, k_it, k_l1, k_l2, k_l3, k_uid, k_iid = jax.random.split(key, 7)

    # ScaledEmbedding: normal(0, 1/embedding_dim); ZeroEmbedding: zeros.
    user_table = (jax.random.normal(k_ut, (num_users, embedding_dim), jnp.float32)
                  / embedding_dim)
    item_table = (jax.random.normal(k_it, (num_items, embedding_dim), jnp.float32)
                  / embedding_dim)
    user_bias_table = jnp.zeros((num_users, 1), jnp.float32)
    item_bias_table = jnp.zeros((num_items, 1), jnp.float32)

    w1, b1 = _linear_params(k_l1, layer_sizes[0], layer_sizes[1])
    w2, b2 = _linear_params(k_l2, layer_sizes[1], layer_sizes[1])
    w3, b3 = _linear_params(k_l3, layer_sizes[1], 1)

    params = (user_table, user_bias_table, item_table, item_bias_table,
              w1, b1, w2, b2, w3, b3)
    prepared = prepare_params(params)

    user_ids = jax.random.randint(k_uid, (batch,), 0, num_users)
    item_ids = jax.random.randint(k_iid, (batch,), 0, num_items)

    fwd = jax.jit(functools.partial(multitask_forward, tile=1024))
    predictions, score = fwd(user_ids, item_ids, prepared)
    jax.block_until_ready((predictions, score))

    # Sanity check against a pure-JAX fp32 reference (kernel uses bf16 MXU
    # inputs with fp32 accumulation and emits bf16 predictions, so tolerance
    # is loosened accordingly).
    ue = user_table[user_ids]; ie = item_table[item_ids]
    ub = user_bias_table[user_ids]; ib = item_bias_table[item_ids]
    pred_ref = ue @ ie.T + ub + ib
    fe = jnp.concatenate([ue, ie, ue * ie], axis=1)
    h = jnp.maximum(fe @ w1 + b1, 0.0)
    h = jnp.maximum(h @ w2 + b2, 0.0)
    score_ref = (h @ w3 + b3)[:, 0]
    assert predictions.shape == (batch, batch)
    assert score.shape == (batch,)
    assert jnp.allclose(predictions.astype(jnp.float32), pred_ref, atol=5e-3), \
        "pred mismatch"
    assert jnp.allclose(score, score_ref, atol=5e-3), "score mismatch"

    print("KERNEL_OK")
</pallas_src>

<mosaic_0001>
module attributes {stable_mosaic.version = 11 : i64} {
  func.func @_multitask_kernel(%arg0: i32, %arg1: i32, %arg2: memref<128x32xbf16, #tpu.memory_space<vmem>>, %arg3: memref<128x32xbf16, #tpu.memory_space<vmem>>, %arg4: memref<128x32xbf16, #tpu.memory_space<vmem>>, %arg5: memref<128x1xf32, #tpu.memory_space<vmem>>, %arg6: memref<32x128xbf16, #tpu.memory_space<vmem>>, %arg7: memref<32x128xbf16, #tpu.memory_space<vmem>>, %arg8: memref<32x128xbf16, #tpu.memory_space<vmem>>, %arg9: memref<1x128xf32, #tpu.memory_space<vmem>>, %arg10: memref<128x128xbf16, #tpu.memory_space<vmem>>, %arg11: memref<1x128xf32, #tpu.memory_space<vmem>>, %arg12: memref<128x128xbf16, #tpu.memory_space<vmem>>, %arg13: memref<1x128xf32, #tpu.memory_space<vmem>>, %arg14: memref<128x128xbf16, #tpu.memory_space<vmem>>, %arg15: memref<128x128xf32, #tpu.memory_space<vmem>>) attributes {dimension_semantics = [#tpu.dimension_semantics<parallel>, #tpu.dimension_semantics<arbitrary>], iteration_bounds = array<i64: 1, 1>, scalar_prefetch = 0 : i64, scratch_operands = 0 : i64, tpu.core_type = #tpu.core_type<tc>, window_params = [{transform_indices = @transform_0, window_bounds = array<i64: 128, 32>}, {transform_indices = @transform_1, window_bounds = array<i64: 128, 32>}, {transform_indices = @transform_2, window_bounds = array<i64: 128, 32>}, {transform_indices = @transform_3, window_bounds = array<i64: 128, 1>}, {pipeline_mode = #tpu.pipeline_mode<synchronous>, transform_indices = @transform_4, window_bounds = array<i64: 32, 128>}, {pipeline_mode = #tpu.pipeline_mode<synchronous>, transform_indices = @transform_5, window_bounds = array<i64: 32, 128>}, {pipeline_mode = #tpu.pipeline_mode<synchronous>, transform_indices = @transform_6, window_bounds = array<i64: 32, 128>}, {pipeline_mode = #tpu.pipeline_mode<synchronous>, transform_indices = @transform_7, window_bounds = array<i64: 1, 128>}, {pipeline_mode = #tpu.pipeline_mode<synchronous>, transform_indices = @transform_8, window_bounds = array<i64: 128, 128>}, {pipeline_mode = #tpu.pipeline_mode<synchronous>, transform_indices = @transform_9, window_bounds = array<i64: 1, 128>}, {pipeline_mode = #tpu.pipeline_mode<synchronous>, transform_indices = @transform_10, window_bounds = array<i64: 128, 128>}, {pipeline_mode = #tpu.pipeline_mode<synchronous>, transform_indices = @transform_11, window_bounds = array<i64: 1, 128>}, {transform_indices = @transform_12, window_bounds = array<i64: 128, 128>}, {transform_indices = @transform_13, window_bounds = array<i64: 128, 128>}]} {
    %c0 = arith.constant 0 : index
    %c0_0 = arith.constant 0 : index
    %0 = vector.load %arg2[%c0, %c0_0] : memref<128x32xbf16, #tpu.memory_space<vmem>>, vector<128x32xbf16>
    %c0_1 = arith.constant 0 : index
    %c0_2 = arith.constant 0 : index
    %1 = vector.load %arg4[%c0_1, %c0_2] : memref<128x32xbf16, #tpu.memory_space<vmem>>, vector<128x32xbf16>
    %cst = arith.constant dense<0.000000e+00> : vector<128x128xf32>
    %2 = tpu.matmul %0, %1, %cst {dimension_numbers = #tpu.dot_dimension_numbers<[1], [1], [0], [0], [0, 0, 1, 0], [], []>} : vector<128x32xbf16>, vector<128x32xbf16>, vector<128x128xf32> -> vector<128x128xf32>
    %c0_3 = arith.constant 0 : index
    %c0_4 = arith.constant 0 : index
    %3 = vector.load %arg5[%c0_3, %c0_4] : memref<128x1xf32, #tpu.memory_space<vmem>>, vector<128x1xf32>
    %4 = vector.broadcast %3 : vector<128x1xf32> to vector<128x128xf32>
    %5 = arith.addf %2, %4 : vector<128x128xf32>
    %6 = arith.truncf %5 : vector<128x128xf32> to vector<128x128xbf16>
    %c0_5 = arith.constant 0 : index
    %c0_6 = arith.constant 0 : index
    %7 = vector.load %arg14[%c0_5, %c0_6] : memref<128x128xbf16, #tpu.memory_space<vmem>>, vector<128x128xbf16>
    tpu.vector_store %arg14[%c0_5, %c0_6], %6 {strides = array<i32>} : memref<128x128xbf16, #tpu.memory_space<vmem>>, vector<128x128xbf16>,
    %c0_i32 = arith.constant 0 : i32
    %8 = arith.cmpi eq, %arg1, %c0_i32 : i32
    %9 = arith.extui %8 : i1 to i32
    %c0_i32_7 = arith.constant 0 : i32
    %10 = arith.cmpi ne, %9, %c0_i32_7 : i32
    scf.if %10 {
      %c0_8 = arith.constant 0 : index
      %c0_9 = arith.constant 0 : index
      %11 = vector.load %arg3[%c0_8, %c0_9] : memref<128x32xbf16, #tpu.memory_space<vmem>>, vector<128x32xbf16>
      %12 = arith.mulf %0, %11 : vector<128x32xbf16>
      %c0_10 = arith.constant 0 : index
      %c0_11 = arith.constant 0 : index
      %13 = vector.load %arg6[%c0_10, %c0_11] : memref<32x128xbf16, #tpu.memory_space<vmem>>, vector<32x128xbf16>
      %cst_12 = arith.constant dense<0.000000e+00> : vector<128x128xf32>
      %14 = tpu.matmul %0, %13, %cst_12 {dimension_numbers = #tpu.dot_dimension_numbers<[1], [0], [0], [1], [0, 0, 1, 1], [], []>} : vector<128x32xbf16>, vector<32x128xbf16>, vector<128x128xf32> -> vector<128x128xf32>
      %c0_13 = arith.constant 0 : index
      %c0_14 = arith.constant 0 : index
      %15 = vector.load %arg7[%c0_13, %c0_14] : memref<32x128xbf16, #tpu.memory_space<vmem>>, vector<32x128xbf16>
      %cst_15 = arith.constant dense<0.000000e+00> : vector<128x128xf32>
      %16 = tpu.matmul %11, %15, %cst_15 {dimension_numbers = #tpu.dot_dimension_numbers<[1], [0], [0], [1], [0, 0, 1, 1], [], []>} : vector<128x32xbf16>, vector<32x128xbf16>, vector<128x128xf32> -> vector<128x128xf32>
      %17 = arith.addf %14, %16 : vector<128x128xf32>
      %c0_16 = arith.constant 0 : index
      %c0_17 = arith.constant 0 : index
      %18 = vector.load %arg8[%c0_16, %c0_17] : memref<32x128xbf16, #tpu.memory_space<vmem>>, vector<32x128xbf16>
      %cst_18 = arith.constant dense<0.000000e+00> : vector<128x128xf32>
      %19 = tpu.matmul %12, %18, %cst_18 {dimension_numbers = #tpu.dot_dimension_numbers<[1], [0], [0], [1], [0, 0, 1, 1], [], []>} : vector<128x32xbf16>, vector<32x128xbf16>, vector<128x128xf32> -> vector<128x128xf32>
      %20 = arith.addf %17, %19 : vector<128x128xf32>
      %c0_19 = arith.constant 0 : index
      %c0_20 = arith.constant 0 : index
      %21 = vector.load %arg9[%c0_19, %c0_20] : memref<1x128xf32, #tpu.memory_space<vmem>>, vector<1x128xf32>
      %22 = vector.broadcast %21 : vector<1x128xf32> to vector<128x128xf32>
      %23 = arith.addf %20, %22 : vector<128x128xf32>
      %cst_21 = arith.constant 0.000000e+00 : f32
      %24 = vector.broadcast %cst_21 : f32 to vector<128x128xf32>
      %25 = arith.maximumf %23, %24 : vector<128x128xf32>
      %26 = arith.truncf %25 : vector<128x128xf32> to vector<128x128xbf16>
      %c0_22 = arith.constant 0 : index
      %c0_23 = arith.constant 0 : index
      %27 = vector.load %arg10[%c0_22, %c0_23] : memref<128x128xbf16, #tpu.memory_space<vmem>>, vector<128x128xbf16>
      %cst_24 = arith.constant dense<0.000000e+00> : vector<128x128xf32>
      %28 = tpu.matmul %26, %27, %cst_24 {dimension_numbers = #tpu.dot_dimension_numbers<[1], [0], [0], [1], [0, 0, 1, 1], [], []>} : vector<128x128xbf16>, vector<128x128xbf16>, vector<128x128xf32> -> vector<128x128xf32>
      %c0_25 = arith.constant 0 : index
      %c0_26 = arith.constant 0 : index
      %29 = vector.load %arg11[%c0_25, %c0_26] : memref<1x128xf32, #tpu.memory_space<vmem>>, vector<1x128xf32>
      %30 = vector.broadcast %29 : vector<1x128xf32> to vector<128x128xf32>
      %31 = arith.addf %28, %30 : vector<128x128xf32>
      %cst_27 = arith.constant 0.000000e+00 : f32
      %32 = vector.broadcast %cst_27 : f32 to vector<128x128xf32>
      %33 = arith.maximumf %31, %32 : vector<128x128xf32>
      %34 = arith.truncf %33 : vector<128x128xf32> to vector<128x128xbf16>
      %c0_28 = arith.constant 0 : index
      %c0_29 = arith.constant 0 : index
      %35 = vector.load %arg12[%c0_28, %c0_29] : memref<128x128xbf16, #tpu.memory_space<vmem>>, vector<128x128xbf16>
      %cst_30 = arith.constant dense<0.000000e+00> : vector<128x128xf32>
      %36 = tpu.matmul %34, %35, %cst_30 {dimension_numbers = #tpu.dot_dimension_numbers<[1], [0], [0], [1], [0, 0, 1, 1], [], []>} : vector<128x128xbf16>, vector<128x128xbf16>, vector<128x128xf32> -> vector<128x128xf32>
      %c0_31 = arith.constant 0 : index
      %c0_32 = arith.constant 0 : index
      %37 = vector.load %arg13[%c0_31, %c0_32] : memref<1x128xf32, #tpu.memory_space<vmem>>, vector<1x128xf32>
      %38 = vector.broadcast %37 : vector<1x128xf32> to vector<128x128xf32>
      %39 = arith.addf %36, %38 : vector<128x128xf32>
      %c0_33 = arith.constant 0 : index
      %c0_34 = arith.constant 0 : index
      %40 = vector.load %arg15[%c0_33, %c0_34] : memref<128x128xf32, #tpu.memory_space<vmem>>, vector<128x128xf32>
      tpu.vector_store %arg15[%c0_33, %c0_34], %39 {strides = array<i32>} : memref<128x128xf32, #tpu.memory_space<vmem>>, vector<128x128xf32>,
    } else {
    }
    return
  }
  func.func @transform_0(%arg0: i32, %arg1: i32) -> (i32, i32) {
    %c0_i32 = arith.constant 0 : i32
    %c0_i32_0 = arith.constant 0 : i32
    return %arg0, %c0_i32 : i32, i32
  }
  func.func @transform_1(%arg0: i32, %arg1: i32) -> (i32, i32) {
    %c0_i32 = arith.constant 0 : i32
    %c0_i32_0 = arith.constant 0 : i32
    return %arg0, %c0_i32 : i32, i32
  }
  func.func @transform_2(%arg0: i32, %arg1: i32) -> (i32, i32) {
    %c0_i32 = arith.constant 0 : i32
    %c0_i32_0 = arith.constant 0 : i32
    return %arg1, %c0_i32 : i32, i32
  }
  func.func @transform_3(%arg0: i32, %arg1: i32) -> (i32, i32) {
    %c0_i32 = arith.constant 0 : i32
    %c0_i32_0 = arith.constant 0 : i32
    return %arg0, %c0_i32 : i32, i32
  }
  func.func @transform_4(%arg0: i32, %arg1: i32) -> (i32, i32) {
    %c0_i32 = arith.constant 0 : i32
    %c0_i32_0 = arith.constant 0 : i32
    %c0_i32_1 = arith.constant 0 : i32
    return %c0_i32, %c0_i32_0 : i32, i32
  }
  func.func @transform_5(%arg0: i32, %arg1: i32) -> (i32, i32) {
    %c0_i32 = arith.constant 0 : i32
    %c0_i32_0 = arith.constant 0 : i32
    %c0_i32_1 = arith.constant 0 : i32
    return %c0_i32, %c0_i32_0 : i32, i32
  }
  func.func @transform_6(%arg0: i32, %arg1: i32) -> (i32, i32) {
    %c0_i32 = arith.constant 0 : i32
    %c0_i32_0 = arith.constant 0 : i32
    %c0_i32_1 = arith.constant 0 : i32
    return %c0_i32, %c0_i32_0 : i32, i32
  }
  func.func @transform_7(%arg0: i32, %arg1: i32) -> (i32, i32) {
    %c0_i32 = arith.constant 0 : i32
    %c0_i32_0 = arith.constant 0 : i32
    %c0_i32_1 = arith.constant 0 : i32
    return %c0_i32, %c0_i32_0 : i32, i32
  }
  func.func @transform_8(%arg0: i32, %arg1: i32) -> (i32, i32) {
    %c0_i32 = arith.constant 0 : i32
    %c0_i32_0 = arith.constant 0 : i32
    %c0_i32_1 = arith.constant 0 : i32
    return %c0_i32, %c0_i32_0 : i32, i32
  }
  func.func @transform_9(%arg0: i32, %arg1: i32) -> (i32, i32) {
    %c0_i32 = arith.constant 0 : i32
    %c0_i32_0 = arith.constant 0 : i32
    %c0_i32_1 = arith.constant 0 : i32
    return %c0_i32, %c0_i32_0 : i32, i32
  }
  func.func @transform_10(%arg0: i32, %arg1: i32) -> (i32, i32) {
    %c0_i32 = arith.constant 0 : i32
    %c0_i32_0 = arith.constant 0 : i32
    %c0_i32_1 = arith.constant 0 : i32
    return %c0_i32, %c0_i32_0 : i32, i32
  }
  func.func @transform_11(%arg0: i32, %arg1: i32) -> (i32, i32) {
    %c0_i32 = arith.constant 0 : i32
    %c0_i32_0 = arith.constant 0 : i32
    %c0_i32_1 = arith.constant 0 : i32
    return %c0_i32, %c0_i32_0 : i32, i32
  }
  func.func @transform_12(%arg0: i32, %arg1: i32) -> (i32, i32) {
    %c0_i32 = arith.constant 0 : i32
    return %arg0, %arg1 : i32, i32
  }
  func.func @transform_13(%arg0: i32, %arg1: i32) -> (i32, i32) {
    %c0_i32 = arith.constant 0 : i32
    %c0_i32_0 = arith.constant 0 : i32
    return %arg0, %c0_i32 : i32, i32
  }
}

</mosaic_0001>

<llo_original>
// kernel: multitask_forward.1
$region0: #{multitask_forward.1}
  #allocation0 [shape = 'u32[]', space=smem, size = 0x4, offset = 0x4, fixed_abs, tag = 'smem constant byte address 0x4 - core index']
  #allocation1 [shape = 'u32[144,128]{1,0:T(1,128)}', space=vmem, size = 0x12000, scoped, tag = 'internal scratch']
  %s0 = inlined_call_operand.vmem [shape: bf16[128,32], index: 0, kind: input, shape index: {}]
  %s1 = inlined_call_operand.vmem [shape: bf16[128,32], index: 1, kind: input, shape index: {}, may-alias: {1,2}]
  %s2 = inlined_call_operand.vmem [shape: bf16[128,32], index: 2, kind: input, shape index: {}, may-alias: {1,2}]
  %s3 = inlined_call_operand.vmem [shape: f32[128,1], index: 3, kind: input, shape index: {}]
  %s4 = inlined_call_operand.vmem [shape: bf16[32,128], index: 4, kind: input, shape index: {}]
  %s5 = inlined_call_operand.vmem [shape: bf16[32,128], index: 5, kind: input, shape index: {}]
  %s6 = inlined_call_operand.vmem [shape: bf16[32,128], index: 6, kind: input, shape index: {}]
  %s7 = inlined_call_operand.vmem [shape: f32[1,128], index: 7, kind: input, shape index: {}]
  %s8 = inlined_call_operand.vmem [shape: bf16[128,128], index: 8, kind: input, shape index: {}]
  %s9 = inlined_call_operand.vmem [shape: f32[1,128], index: 9, kind: input, shape index: {}]
  %s10 = inlined_call_operand.vmem [shape: bf16[128,128], index: 10, kind: input, shape index: {}]
  %s11 = inlined_call_operand.vmem [shape: f32[1,128], index: 11, kind: input, shape index: {}]
  %s12 = inlined_call_operand.vmem [shape: bf16[128,128], index: 12, kind: output, shape index: {0}]
  %s13 = inlined_call_operand.vmem [shape: f32[128,128], index: 13, kind: output, shape index: {1}]
  %14 = xla_tuple %s12, %s13
  %s15 = sld [smem:[#allocation0]]
  $region70: #{multitask_forward.1} parent=0
    _
  %s17 = ssub.s32 1, %s15
  %s18 = scalar_select 0, %s17, %s15
  // Predicated region
  $region2: #{multitask_forward.1} parent=0 // pred_check
    _
  $region3: #{multitask_forward.1} parent=0 // pred_check_branch
    %20 = sbr.rel (0) target = $region5
  $region4: #{multitask_forward.1} parent=0 // pred_region
    _
  $region5: #{multitask_forward.1} parent=0 // pred_fallthru
    _
  // Predicated region
  $region6: #{multitask_forward.1} parent=0 // pred_check
    _
  $region7: #{multitask_forward.1} parent=0 // pred_check_branch
    %22 = sbr.rel (0) target = $region9
  $region8: #{multitask_forward.1} parent=0 // pred_region
    _
  $region9: #{multitask_forward.1} parent=0 // pred_fallthru
    _
  // Predicated region
  $region10: #{multitask_forward.1} parent=0 // pred_check
    _
  $region11: #{multitask_forward.1} parent=0 // pred_check_branch
    %24 = sbr.rel (0) target = $region13
  $region12: #{multitask_forward.1} parent=0 // pred_region
    _
  $region13: #{multitask_forward.1} parent=0 // pred_fallthru
    _
  // Predicated region
  $region14: #{multitask_forward.1} parent=0 // pred_check
    _
  $region15: #{multitask_forward.1} parent=0 // pred_check_branch
    %26 = sbr.rel (0) target = $region17
  $region16: #{multitask_forward.1} parent=0 // pred_region
    _
  $region17: #{multitask_forward.1} parent=0 // pred_fallthru
    _
  // Predicated region
  $region18: #{multitask_forward.1} parent=0 // pred_check
    _
  $region19: #{multitask_forward.1} parent=0 // pred_check_branch
    %28 = sbr.rel (0) target = $region21
  $region20: #{multitask_forward.1} parent=0 // pred_region
    _
  $region21: #{multitask_forward.1} parent=0 // pred_fallthru
    _
  // Predicated region
  $region22: #{multitask_forward.1} parent=0 // pred_check
    _
  $region23: #{multitask_forward.1} parent=0 // pred_check_branch
    %30 = sbr.rel (0) target = $region25
  $region24: #{multitask_forward.1} parent=0 // pred_region
    _
  $region25: #{multitask_forward.1} parent=0 // pred_fallthru
    _
  // Predicated region
  $region26: #{multitask_forward.1} parent=0 // pred_check
    _
  $region27: #{multitask_forward.1} parent=0 // pred_check_branch
    %32 = sbr.rel (0) target = $region29
  $region28: #{multitask_forward.1} parent=0 // pred_region
    _
  $region29: #{multitask_forward.1} parent=0 // pred_fallthru
    _
  // Predicated region
  $region30: #{multitask_forward.1} parent=0 // pred_check
    _
  $region31: #{multitask_forward.1} parent=0 // pred_check_branch
    %34 = sbr.rel (0) target = $region33
  $region32: #{multitask_forward.1} parent=0 // pred_region
    _
  $region33: #{multitask_forward.1} parent=0 // pred_fallthru
    _
  // Predicated region
  $region34: #{multitask_forward.1} parent=0 // pred_check
    _
  $region35: #{multitask_forward.1} parent=0 // pred_check_branch
    %36 = sbr.rel (0) target = $region37
  $region36: #{multitask_forward.1} parent=0 // pred_region
    _
  $region37: #{multitask_forward.1} parent=0 // pred_fallthru
    _
  // Predicated region
  $region38: #{multitask_forward.1} parent=0 // pred_check
    _
  $region39: #{multitask_forward.1} parent=0 // pred_check_branch
    %38 = sbr.rel (0) target = $region41
  $region40: #{multitask_forward.1} parent=0 // pred_region
    _
  $region41: #{multitask_forward.1} parent=0 // pred_fallthru
    _
  // Predicated region
  $region42: #{multitask_forward.1} parent=0 // pred_check
    _
  $region43: #{multitask_forward.1} parent=0 // pred_check_branch
    %40 = sbr.rel (0) target = $region45
  $region44: #{multitask_forward.1} parent=0 // pred_region
    _
  $region45: #{multitask_forward.1} parent=0 // pred_fallthru
    _
  // Predicated region
  $region46: #{multitask_forward.1} parent=0 // pred_check
    _
  $region47: #{multitask_forward.1} parent=0 // pred_check_branch
    %42 = sbr.rel (0) target = $region49
  $region48: #{multitask_forward.1} parent=0 // pred_region
    _
  $region49: #{multitask_forward.1} parent=0 // pred_fallthru
    _
  %v44 = vld [vmem:[%s0] sm:$0xf]
  %v45 = vld [vmem:[%s0 + $0x4] sm:$0xf]
  %v46 = vld [vmem:[%s0 + $0x8] sm:$0xf]
  %v47 = vld [vmem:[%s0 + $0xc] sm:$0xf]
  %v48 = vld [vmem:[%s0 + $0x10] sm:$0xf]
  %v49 = vld [vmem:[%s0 + $0x14] sm:$0xf]
  %v50 = vld [vmem:[%s0 + $0x18] sm:$0xf]
  %v51 = vld [vmem:[%s0 + $0x1c] sm:$0xf]
  %v52 = vld [vmem:[%s0 + $0x20] sm:$0xf]
  %v53 = vld [vmem:[%s0 + $0x24] sm:$0xf]
  %v54 = vld [vmem:[%s0 + $0x28] sm:$0xf]
  %v55 = vld [vmem:[%s0 + $0x2c] sm:$0xf]
  %v56 = vld [vmem:[%s0 + $0x30] sm:$0xf]
  %v57 = vld [vmem:[%s0 + $0x34] sm:$0xf]
  %v58 = vld [vmem:[%s0 + $0x38] sm:$0xf]
  %v59 = vld [vmem:[%s0 + $0x3c] sm:$0xf]
  %v60 = vld [vmem:[%s2] sm:$0xf]
  %v61 = vld [vmem:[%s2 + $0x4] sm:$0xf]
  %v62 = vld [vmem:[%s2 + $0x8] sm:$0xf]
  %v63 = vld [vmem:[%s2 + $0xc] sm:$0xf]
  %v64 = vld [vmem:[%s2 + $0x10] sm:$0xf]
  %v65 = vld [vmem:[%s2 + $0x14] sm:$0xf]
  %v66 = vld [vmem:[%s2 + $0x18] sm:$0xf]
  %v67 = vld [vmem:[%s2 + $0x1c] sm:$0xf]
  %v68 = vld [vmem:[%s2 + $0x20] sm:$0xf]
  %v69 = vld [vmem:[%s2 + $0x24] sm:$0xf]
  %v70 = vld [vmem:[%s2 + $0x28] sm:$0xf]
  %v71 = vld [vmem:[%s2 + $0x2c] sm:$0xf]
  %v72 = vld [vmem:[%s2 + $0x30] sm:$0xf]
  %v73 = vld [vmem:[%s2 + $0x34] sm:$0xf]
  %v74 = vld [vmem:[%s2 + $0x38] sm:$0xf]
  %v75 = vld [vmem:[%s2 + $0x3c] sm:$0xf]
  %v76 = vld [vmem:[%s3] sm:$0xff]
  %v77 = vld [vmem:[%s3 + $0x8] sm:$0xff]
  %v78 = vld [vmem:[%s3 + $0x10] sm:$0xff]
  %v79 = vld [vmem:[%s3 + $0x18] sm:$0xff]
  %v80 = vld [vmem:[%s3 + $0x20] sm:$0xff]
  %v81 = vld [vmem:[%s3 + $0x28] sm:$0xff]
  %v82 = vld [vmem:[%s3 + $0x30] sm:$0xff]
  %v83 = vld [vmem:[%s3 + $0x38] sm:$0xff]
  %v84 = vld [vmem:[%s3 + $0x40] sm:$0xff]
  %v85 = vld [vmem:[%s3 + $0x48] sm:$0xff]
  %v86 = vld [vmem:[%s3 + $0x50] sm:$0xff]
  %v87 = vld [vmem:[%s3 + $0x58] sm:$0xff]
  %v88 = vld [vmem:[%s3 + $0x60] sm:$0xff]
  %v89 = vld [vmem:[%s3 + $0x68] sm:$0xff]
  %v90 = vld [vmem:[%s3 + $0x70] sm:$0xff]
  %v91 = vld [vmem:[%s3 + $0x78] sm:$0xff]
  %93 = vset.pattern.permute.xlu0 0
  %94 = vperm.xlu0 %93, %v76
  %v95 = vpop.permute.xlu0 %94
  %98 = vset.pattern.permute.xlu0 0
  %99 = vperm.xlu0 %98, %v77
  %v100 = vpop.permute.xlu0 %99
  %103 = vset.pattern.permute.xlu0 0
  %104 = vperm.xlu0 %103, %v78
  %v105 = vpop.permute.xlu0 %104
  %108 = vset.pattern.permute.xlu0 0
  %109 = vperm.xlu0 %108, %v79
  %v110 = vpop.permute.xlu0 %109
  %113 = vset.pattern.permute.xlu0 0
  %114 = vperm.xlu0 %113, %v80
  %v115 = vpop.permute.xlu0 %114
  %118 = vset.pattern.permute.xlu0 0
  %119 = vperm.xlu0 %118, %v81
  %v120 = vpop.permute.xlu0 %119
  %123 = vset.pattern.permute.xlu0 0
  %124 = vperm.xlu0 %123, %v82
  %v125 = vpop.permute.xlu0 %124
  %128 = vset.pattern.permute.xlu0 0
  %129 = vperm.xlu0 %128, %v83
  %v130 = vpop.permute.xlu0 %129
  %133 = vset.pattern.permute.xlu0 0
  %134 = vperm.xlu0 %133, %v84
  %v135 = vpop.permute.xlu0 %134
  %138 = vset.pattern.permute.xlu0 0
  %139 = vperm.xlu0 %138, %v85
  %v140 = vpop.permute.xlu0 %139
  %143 = vset.pattern.permute.xlu0 0
  %144 = vperm.xlu0 %143, %v86
  %v145 = vpop.permute.xlu0 %144
  %148 = vset.pattern.permute.xlu0 0
  %149 = vperm.xlu0 %148, %v87
  %v150 = vpop.permute.xlu0 %149
  %153 = vset.pattern.permute.xlu0 0
  %154 = vperm.xlu0 %153, %v88
  %v155 = vpop.permute.xlu0 %154
  %158 = vset.pattern.permute.xlu0 0
  %159 = vperm.xlu0 %158, %v89
  %v160 = vpop.permute.xlu0 %159
  %163 = vset.pattern.permute.xlu0 0
  %164 = vperm.xlu0 %163, %v90
  %v165 = vpop.permute.xlu0 %164
  %168 = vset.pattern.permute.xlu0 0
  %169 = vperm.xlu0 %168, %v91
  %v170 = vpop.permute.xlu0 %169
  %v188 = vunpack.c.l.b16 %v44
  %v189 = vunpack.c.l.b16 %v45
  %v190 = vunpack.c.l.b16 %v46
  %v191 = vunpack.c.l.b16 %v47
  %v192 = vunpack.c.l.b16 %v48
  %v193 = vunpack.c.l.b16 %v49
  %v194 = vunpack.c.l.b16 %v50
  %v195 = vunpack.c.l.b16 %v51
  %v196 = vunpack.c.l.b16 %v52
  %v197 = vunpack.c.l.b16 %v53
  %v198 = vunpack.c.l.b16 %v54
  %v199 = vunpack.c.l.b16 %v55
  %v200 = vunpack.c.l.b16 %v56
  %v201 = vunpack.c.l.b16 %v57
  %v202 = vunpack.c.l.b16 %v58
  %v203 = vunpack.c.l.b16 %v59
  %v204 = vpack.c.b16 %v189, %v188
  %v205 = vpack.c.b16 %v191, %v190
  %v206 = vpack.c.b16 %v193, %v192
  %v207 = vpack.c.b16 %v195, %v194
  %v208 = vpack.c.b16 %v197, %v196
  %v209 = vpack.c.b16 %v199, %v198
  %v210 = vpack.c.b16 %v201, %v200
  %v211 = vpack.c.b16 %v203, %v202
  %v228 = vunpack.c.l.b16 %v60
  %v229 = vunpack.c.l.b16 %v61
  %v230 = vunpack.c.l.b16 %v62
  %v231 = vunpack.c.l.b16 %v63
  %v232 = vunpack.c.l.b16 %v64
  %v233 = vunpack.c.l.b16 %v65
  %v234 = vunpack.c.l.b16 %v66
  %v235 = vunpack.c.l.b16 %v67
  %v236 = vunpack.c.l.b16 %v68
  %v237 = vunpack.c.l.b16 %v69
  %v238 = vunpack.c.l.b16 %v70
  %v239 = vunpack.c.l.b16 %v71
  %v240 = vunpack.c.l.b16 %v72
  %v241 = vunpack.c.l.b16 %v73
  %v242 = vunpack.c.l.b16 %v74
  %v243 = vunpack.c.l.b16 %v75
  %v244 = vpack.c.b16 %v229, %v228
  %v245 = vpack.c.b16 %v231, %v230
  %v246 = vpack.c.b16 %v233, %v232
  %v247 = vpack.c.b16 %v235, %v234
  %v248 = vpack.c.b16 %v237, %v236
  %v249 = vpack.c.b16 %v239, %v238
  %v250 = vpack.c.b16 %v241, %v240
  %v251 = vpack.c.b16 %v243, %v242
  %vm252 = vcmask 261120
  %v254 = vsel %vm252, %v204, 0
  %v257 = vsel %vm252, %v205, 0
  %v260 = vsel %vm252, %v206, 0
  %v263 = vsel %vm252, %v207, 0
  %v266 = vsel %vm252, %v208, 0
  %v269 = vsel %vm252, %v209, 0
  %v272 = vsel %vm252, %v210, 0
  %v275 = vsel %vm252, %v211, 0
  %v278 = vsel %vm252, %v244, 0
  %v281 = vsel %vm252, %v245, 0
  %v284 = vsel %vm252, %v246, 0
  %v287 = vsel %vm252, %v247, 0
  %v290 = vsel %vm252, %v248, 0
  %v293 = vsel %vm252, %v249, 0
  %v296 = vsel %vm252, %v250, 0
  %v299 = vsel %vm252, %v251, 0
  %301 = vmatprep.subr.bf16.mxu0 0
  %302 = vmatpush1.bf16.xpose.msra.mxu0 %v299
  %303 = vmatprep.subr.bf16.mxu0 0
  %304 = vmatpush1.bf16.xpose.msra.mxu0 %v296
  %305 = vmatprep.subr.bf16.mxu0 0
  %306 = vmatpush1.bf16.xpose.msra.mxu0 %v293
  %307 = vmatprep.subr.bf16.mxu0 0
  %308 = vmatpush1.bf16.xpose.msra.mxu0 %v290
  %309 = vmatprep.subr.bf16.mxu0 0
  %310 = vmatpush1.bf16.xpose.msra.mxu0 %v287
  %311 = vmatprep.subr.bf16.mxu0 0
  %312 = vmatpush1.bf16.xpose.msra.mxu0 %v284
  %313 = vmatprep.subr.bf16.mxu0 0
  %314 = vmatpush1.bf16.xpose.msra.mxu0 %v281
  %315 = vmatprep.subr.bf16.mxu0 0
  %316 = vmatpush1.bf16.xpose.msra.mxu0 %v278
  %317 = vmatprep.subr.bf16.mxu0 0
  %318 = vmatpush2.bf16.xpose.msra.mxu0 0
  %319 = vmatprep.subr.bf16.mxu0 0
  %320 = vmatpush2.bf16.xpose.msra.mxu0 0
  %321 = vmatprep.subr.bf16.mxu0 0
  %322 = vmatpush2.bf16.xpose.msra.mxu0 0
  %323 = vmatprep.subr.bf16.mxu0 0
  %324 = vmatpush2.bf16.xpose.msra.mxu0 0
  %325 = vmatprep.subr.bf16.mxu0 0
  %326 = vmatpush2.bf16.xpose.msra.mxu0 0
  %327 = vmatprep.subr.bf16.mxu0 0
  %328 = vmatpush2.bf16.xpose.msra.mxu0 0
  %329 = vmatprep.subr.bf16.mxu0 0
  %330 = vmatpush2.bf16.xpose.msra.mxu0 0
  %331 = vmatprep.subr.bf16.mxu0 0
  %332 = vmatpush2.bf16.xpose.msra.mxu0 0
  %333 = vmatprep.mubr.bf16.mxu0 0
  %334 = vmatmul.mubr.bf16.gmra.mxu0 %v254
  %v335 = vpop.f32.mrf.mxu0
  %v336 = vadd.f32 %v95, %v335
  %v337 = vpop.f32.mrf.mxu0
  %v338 = vpop.f32.mrf.mxu0
  %v339 = vadd.f32 %v100, %v338
  %v340 = vpop.f32.mrf.mxu0
  %341 = vmatprep.mubr.bf16.mxu0 0
  %342 = vmatmul.mubr.bf16.gmra.mxu0 %v257
  %v343 = vpop.f32.mrf.mxu0
  %v344 = vadd.f32 %v105, %v343
  %v345 = vpop.f32.mrf.mxu0
  %v346 = vpop.f32.mrf.mxu0
  %v347 = vadd.f32 %v110, %v346
  %v348 = vpop.f32.mrf.mxu0
  %349 = vmatprep.mubr.bf16.mxu0 0
  %350 = vmatmul.mubr.bf16.gmra.mxu0 %v260
  %v351 = vpop.f32.mrf.mxu0
  %v352 = vadd.f32 %v115, %v351
  %v353 = vpop.f32.mrf.mxu0
  %v354 = vpop.f32.mrf.mxu0
  %v355 = vadd.f32 %v120, %v354
  %v356 = vpop.f32.mrf.mxu0
  %357 = vmatprep.mubr.bf16.mxu0 0
  %358 = vmatmul.mubr.bf16.gmra.mxu0 %v263
  %v359 = vpop.f32.mrf.mxu0
  %v360 = vadd.f32 %v125, %v359
  %v361 = vpop.f32.mrf.mxu0
  %v362 = vpop.f32.mrf.mxu0
  %v363 = vadd.f32 %v130, %v362
  %v364 = vpop.f32.mrf.mxu0
  %365 = vmatprep.mubr.bf16.mxu0 0
  %366 = vmatmul.mubr.bf16.gmra.mxu0 %v266
  %v367 = vpop.f32.mrf.mxu0
  %v368 = vadd.f32 %v135, %v367
  %v369 = vpop.f32.mrf.mxu0
  %v370 = vpop.f32.mrf.mxu0
  %v371 = vadd.f32 %v140, %v370
  %v372 = vpop.f32.mrf.mxu0
  %373 = vmatprep.mubr.bf16.mxu0 0
  %374 = vmatmul.mubr.bf16.gmra.mxu0 %v269
  %v375 = vpop.f32.mrf.mxu0
  %v376 = vadd.f32 %v145, %v375
  %v377 = vpop.f32.mrf.mxu0
  %v378 = vpop.f32.mrf.mxu0
  %v379 = vadd.f32 %v150, %v378
  %v380 = vpop.f32.mrf.mxu0
  %381 = vmatprep.mubr.bf16.mxu0 0
  %382 = vmatmul.mubr.bf16.gmra.mxu0 %v272
  %v383 = vpop.f32.mrf.mxu0
  %v384 = vadd.f32 %v155, %v383
  %v385 = vpop.f32.mrf.mxu0
  %v386 = vpop.f32.mrf.mxu0
  %v387 = vadd.f32 %v160, %v386
  %v388 = vpop.f32.mrf.mxu0
  %389 = vmatprep.mubr.bf16.mxu0 0
  %390 = vmatmul.mubr.bf16.gmra.mxu0 %v275
  %v391 = vpop.f32.mrf.mxu0
  %v392 = vadd.f32 %v165, %v391
  %v393 = vpop.f32.mrf.mxu0
  %v394 = vpop.f32.mrf.mxu0
  %v395 = vadd.f32 %v170, %v394
  %v396 = vpop.f32.mrf.mxu0
  %397 = vdwg.mxu0
  %v398 = vpack.c.bf16 %v339, %v336
  %v399 = vpack.c.bf16 %v347, %v344
  %v400 = vpack.c.bf16 %v355, %v352
  %v401 = vpack.c.bf16 %v363, %v360
  %v402 = vpack.c.bf16 %v371, %v368
  %v403 = vpack.c.bf16 %v379, %v376
  %v404 = vpack.c.bf16 %v387, %v384
  %v405 = vpack.c.bf16 %v395, %v392
  %v414 = vunpack.c.l.b16 %v398
  %v415 = vunpack.c.h.b16 %v398
  %v416 = vunpack.c.l.b16 %v399
  %v417 = vunpack.c.h.b16 %v399
  %v418 = vunpack.c.l.b16 %v400
  %v419 = vunpack.c.h.b16 %v400
  %v420 = vunpack.c.l.b16 %v401
  %v421 = vunpack.c.h.b16 %v401
  %v422 = vunpack.c.l.b16 %v402
  %v423 = vunpack.c.h.b16 %v402
  %v424 = vunpack.c.l.b16 %v403
  %v425 = vunpack.c.h.b16 %v403
  %v426 = vunpack.c.l.b16 %v404
  %v427 = vunpack.c.h.b16 %v404
  %v428 = vunpack.c.l.b16 %v405
  %v429 = vunpack.c.h.b16 %v405
  %v430 = vpack.c.b16 %v414, %v414
  %v431 = vpack.c.b16 %v415, %v415
  %v432 = vpack.c.b16 %v416, %v416
  %v433 = vpack.c.b16 %v417, %v417
  %v434 = vpack.c.b16 %v418, %v418
  %v435 = vpack.c.b16 %v419, %v419
  %v436 = vpack.c.b16 %v420, %v420
  %v437 = vpack.c.b16 %v421, %v421
  %v438 = vpack.c.b16 %v422, %v422
  %v439 = vpack.c.b16 %v423, %v423
  %v440 = vpack.c.b16 %v424, %v424
  %v441 = vpack.c.b16 %v425, %v425
  %v442 = vpack.c.b16 %v426, %v426
  %v443 = vpack.c.b16 %v427, %v427
  %v444 = vpack.c.b16 %v428, %v428
  %v445 = vpack.c.b16 %v429, %v429
  %462 = vst [vmem:[%s12] sm:$0xf] %v430
  %463 = vst [vmem:[%s12 + $0x4] sm:$0xf] %v431
  %464 = vst [vmem:[%s12 + $0x8] sm:$0xf] %v432
  %465 = vst [vmem:[%s12 + $0xc] sm:$0xf] %v433
  %466 = vst [vmem:[%s12 + $0x10] sm:$0xf] %v434
  %467 = vst [vmem:[%s12 + $0x14] sm:$0xf] %v435
  %468 = vst [vmem:[%s12 + $0x18] sm:$0xf] %v436
  %469 = vst [vmem:[%s12 + $0x1c] sm:$0xf] %v437
  %470 = vst [vmem:[%s12 + $0x20] sm:$0xf] %v438
  %471 = vst [vmem:[%s12 + $0x24] sm:$0xf] %v439
  %472 = vst [vmem:[%s12 + $0x28] sm:$0xf] %v440
  %473 = vst [vmem:[%s12 + $0x2c] sm:$0xf] %v441
  %474 = vst [vmem:[%s12 + $0x30] sm:$0xf] %v442
  %475 = vst [vmem:[%s12 + $0x34] sm:$0xf] %v443
  %476 = vst [vmem:[%s12 + $0x38] sm:$0xf] %v444
  %477 = vst [vmem:[%s12 + $0x3c] sm:$0xf] %v445
  %p478 = scmp.eq.s32.totalorder 0, 0
  // Predicated region
  $region50: #{multitask_forward.1} parent=0 // pred_check
    %p479 = pneg %p478
  $region51: #{multitask_forward.1} parent=0 // pred_check_branch
    %481 = sbr.rel (%p479) target = $region53
  $region52: #{multitask_forward.1} parent=0 // pred_region
    %v482 = vld [vmem:[%s1] sm:$0xf]
    %v483 = vld [vmem:[%s1 + $0x4] sm:$0xf]
    %v484 = vld [vmem:[%s1 + $0x8] sm:$0xf]
    %v485 = vld [vmem:[%s1 + $0xc] sm:$0xf]
    %v486 = vld [vmem:[%s1 + $0x10] sm:$0xf]
    %v487 = vld [vmem:[%s1 + $0x14] sm:$0xf]
    %v488 = vld [vmem:[%s1 + $0x18] sm:$0xf]
    %v489 = vld [vmem:[%s1 + $0x1c] sm:$0xf]
    %v490 = vld [vmem:[%s1 + $0x20] sm:$0xf]
    %v491 = vld [vmem:[%s1 + $0x24] sm:$0xf]
    %v492 = vld [vmem:[%s1 + $0x28] sm:$0xf]
    %v493 = vld [vmem:[%s1 + $0x2c] sm:$0xf]
    %v494 = vld [vmem:[%s1 + $0x30] sm:$0xf]
    %v495 = vld [vmem:[%s1 + $0x34] sm:$0xf]
    %v496 = vld [vmem:[%s1 + $0x38] sm:$0xf]
    %v497 = vld [vmem:[%s1 + $0x3c] sm:$0xf]
    %v498 = vmul.bf16 %v44, %v482
    %v499 = vmul.bf16 %v45, %v483
    %v500 = vmul.bf16 %v46, %v484
    %v501 = vmul.bf16 %v47, %v485
    %v502 = vmul.bf16 %v48, %v486
    %v503 = vmul.bf16 %v49, %v487
    %v504 = vmul.bf16 %v50, %v488
    %v505 = vmul.bf16 %v51, %v489
    %v506 = vmul.bf16 %v52, %v490
    %v507 = vmul.bf16 %v53, %v491
    %v508 = vmul.bf16 %v54, %v492
    %v509 = vmul.bf16 %v55, %v493
    %v510 = vmul.bf16 %v56, %v494
    %v511 = vmul.bf16 %v57, %v495
    %v512 = vmul.bf16 %v58, %v496
    %v513 = vmul.bf16 %v59, %v497
    %v514 = vld [vmem:[%s4] sm:$0xf]
    %v515 = vld [vmem:[%s4 + $0x4] sm:$0xf]
    %v516 = vld [vmem:[%s4 + $0x8] sm:$0xf]
    %v517 = vld [vmem:[%s4 + $0xc] sm:$0xf]
    %v518 = vld [vmem:[%s5] sm:$0xf]
    %v519 = vld [vmem:[%s5 + $0x4] sm:$0xf]
    %v520 = vld [vmem:[%s5 + $0x8] sm:$0xf]
    %v521 = vld [vmem:[%s5 + $0xc] sm:$0xf]
    %v538 = vunpack.c.l.b16 %v482
    %v539 = vunpack.c.l.b16 %v483
    %v540 = vunpack.c.l.b16 %v484
    %v541 = vunpack.c.l.b16 %v485
    %v542 = vunpack.c.l.b16 %v486
    %v543 = vunpack.c.l.b16 %v487
    %v544 = vunpack.c.l.b16 %v488
    %v545 = vunpack.c.l.b16 %v489
    %v546 = vunpack.c.l.b16 %v490
    %v547 = vunpack.c.l.b16 %v491
    %v548 = vunpack.c.l.b16 %v492
    %v549 = vunpack.c.l.b16 %v493
    %v550 = vunpack.c.l.b16 %v494
    %v551 = vunpack.c.l.b16 %v495
    %v552 = vunpack.c.l.b16 %v496
    %v553 = vunpack.c.l.b16 %v497
    %v554 = vpack.c.b16 %v539, %v538
    %v555 = vpack.c.b16 %v541, %v540
    %v556 = vpack.c.b16 %v543, %v542
    %v557 = vpack.c.b16 %v545, %v544
    %v558 = vpack.c.b16 %v547, %v546
    %v559 = vpack.c.b16 %v549, %v548
    %v560 = vpack.c.b16 %v551, %v550
    %v561 = vpack.c.b16 %v553, %v552
    %v566 = vunpack.c.l.b16 %v518
    %v567 = vunpack.c.l.b16 %v519
    %v568 = vunpack.c.l.b16 %v520
    %v569 = vunpack.c.l.b16 %v521
    %v570 = vpack.c.b16 %v567, %v566
    %v571 = vpack.c.b16 %v569, %v568
    %v575 = vsel %vm252, %v554, 0
    %v578 = vsel %vm252, %v555, 0
    %v581 = vsel %vm252, %v556, 0
    %v584 = vsel %vm252, %v557, 0
    %v587 = vsel %vm252, %v558, 0
    %v590 = vsel %vm252, %v559, 0
    %v593 = vsel %vm252, %v560, 0
    %v596 = vsel %vm252, %v561, 0
    %598 = vmatprep.subr.bf16.mxu0 0
    %599 = vmatpush1.bf16.msra.mxu0 0
    %600 = vmatprep.subr.bf16.mxu0 0
    %601 = vmatpush1.bf16.msra.mxu0 0
    %602 = vmatprep.subr.bf16.mxu0 0
    %603 = vmatpush1.bf16.msra.mxu0 0
    %604 = vmatprep.subr.bf16.mxu0 0
    %605 = vmatpush1.bf16.msra.mxu0 0
    %606 = vmatprep.subr.bf16.mxu0 0
    %607 = vmatpush1.bf16.msra.mxu0 0
    %608 = vmatprep.subr.bf16.mxu0 0
    %609 = vmatpush1.bf16.msra.mxu0 0
    %610 = vmatprep.subr.bf16.mxu0 0
    %611 = vmatpush1.bf16.msra.mxu0 %v571
    %612 = vmatprep.subr.bf16.mxu0 0
    %613 = vmatpush1.bf16.msra.mxu0 %v570
    %614 = vmatprep.subr.bf16.mxu0 0
    %615 = vmatpush2.bf16.msra.mxu0 0
    %616 = vmatprep.subr.bf16.mxu0 0
    %617 = vmatpush2.bf16.msra.mxu0 0
    %618 = vmatprep.subr.bf16.mxu0 0
    %619 = vmatpush2.bf16.msra.mxu0 0
    %620 = vmatprep.subr.bf16.mxu0 0
    %621 = vmatpush2.bf16.msra.mxu0 0
    %622 = vmatprep.subr.bf16.mxu0 0
    %623 = vmatpush2.bf16.msra.mxu0 0
    %624 = vmatprep.subr.bf16.mxu0 0
    %625 = vmatpush2.bf16.msra.mxu0 0
    %626 = vmatprep.subr.bf16.mxu0 0
    %627 = vmatpush2.bf16.msra.mxu0 0
    %628 = vmatprep.subr.bf16.mxu0 0
    %629 = vmatpush2.bf16.msra.mxu0 0
    %630 = vmatprep.mubr.bf16.mxu0 0
    %631 = vmatmul.mubr.bf16.gmra.mxu0 %v575
    %v632 = vpop.f32.mrf.mxu0
    %v633 = vadd.f32 0.0, %v632
    %v634 = vpop.f32.mrf.mxu0
    %v635 = vpop.f32.mrf.mxu0
    %v636 = vadd.f32 0.0, %v635
    %v637 = vpop.f32.mrf.mxu0
    %638 = vmatprep.mubr.bf16.mxu0 0
    %639 = vmatmul.mubr.bf16.gmra.mxu0 %v578
    %v640 = vpop.f32.mrf.mxu0
    %v641 = vadd.f32 0.0, %v640
    %v642 = vpop.f32.mrf.mxu0
    %v643 = vpop.f32.mrf.mxu0
    %v644 = vadd.f32 0.0, %v643
    %v645 = vpop.f32.mrf.mxu0
    %646 = vmatprep.mubr.bf16.mxu0 0
    %647 = vmatmul.mubr.bf16.gmra.mxu0 %v581
    %v648 = vpop.f32.mrf.mxu0
    %v649 = vadd.f32 0.0, %v648
    %v650 = vpop.f32.mrf.mxu0
    %v651 = vpop.f32.mrf.mxu0
    %v652 = vadd.f32 0.0, %v651
    %v653 = vpop.f32.mrf.mxu0
    %654 = vmatprep.mubr.bf16.mxu0 0
    %655 = vmatmul.mubr.bf16.gmra.mxu0 %v584
    %v656 = vpop.f32.mrf.mxu0
    %v657 = vadd.f32 0.0, %v656
    %v658 = vpop.f32.mrf.mxu0
    %v659 = vpop.f32.mrf.mxu0
    %v660 = vadd.f32 0.0, %v659
    %v661 = vpop.f32.mrf.mxu0
    %662 = vmatprep.mubr.bf16.mxu0 0
    %663 = vmatmul.mubr.bf16.gmra.mxu0 %v587
    %v664 = vpop.f32.mrf.mxu0
    %v665 = vadd.f32 0.0, %v664
    %v666 = vpop.f32.mrf.mxu0
    %v667 = vpop.f32.mrf.mxu0
    %v668 = vadd.f32 0.0, %v667
    %v669 = vpop.f32.mrf.mxu0
    %670 = vmatprep.mubr.bf16.mxu0 0
    %671 = vmatmul.mubr.bf16.gmra.mxu0 %v590
    %v672 = vpop.f32.mrf.mxu0
    %v673 = vadd.f32 0.0, %v672
    %v674 = vpop.f32.mrf.mxu0
    %v675 = vpop.f32.mrf.mxu0
    %v676 = vadd.f32 0.0, %v675
    %v677 = vpop.f32.mrf.mxu0
    %678 = vmatprep.mubr.bf16.mxu0 0
    %679 = vmatmul.mubr.bf16.gmra.mxu0 %v593
    %v680 = vpop.f32.mrf.mxu0
    %v681 = vadd.f32 0.0, %v680
    %v682 = vpop.f32.mrf.mxu0
    %v683 = vpop.f32.mrf.mxu0
    %v684 = vadd.f32 0.0, %v683
    %v685 = vpop.f32.mrf.mxu0
    %686 = vmatprep.mubr.bf16.mxu0 0
    %687 = vmatmul.mubr.bf16.gmra.mxu0 %v596
    %v688 = vpop.f32.mrf.mxu0
    %v689 = vadd.f32 0.0, %v688
    %v690 = vpop.f32.mrf.mxu0
    %v691 = vpop.f32.mrf.mxu0
    %v692 = vadd.f32 0.0, %v691
    %v693 = vpop.f32.mrf.mxu0
    %694 = vdwg.mxu0
    %v699 = vunpack.c.l.b16 %v514
    %v700 = vunpack.c.l.b16 %v515
    %v701 = vunpack.c.l.b16 %v516
    %v702 = vunpack.c.l.b16 %v517
    %v703 = vpack.c.b16 %v700, %v699
    %v704 = vpack.c.b16 %v702, %v701
    %707 = vmatprep.subr.bf16.mxu0 0
    %708 = vmatpush1.bf16.msra.mxu0 0
    %709 = vmatprep.subr.bf16.mxu0 0
    %710 = vmatpush1.bf16.msra.mxu0 0
    %711 = vmatprep.subr.bf16.mxu0 0
    %712 = vmatpush1.bf16.msra.mxu0 0
    %713 = vmatprep.subr.bf16.mxu0 0
    %714 = vmatpush1.bf16.msra.mxu0 0
    %715 = vmatprep.subr.bf16.mxu0 0
    %716 = vmatpush1.bf16.msra.mxu0 0
    %717 = vmatprep.subr.bf16.mxu0 0
    %718 = vmatpush1.bf16.msra.mxu0 0
    %719 = vmatprep.subr.bf16.mxu0 0
    %720 = vmatpush1.bf16.msra.mxu0 %v704
    %721 = vmatprep.subr.bf16.mxu0 0
    %722 = vmatpush1.bf16.msra.mxu0 %v703
    %723 = vmatprep.subr.bf16.mxu0 0
    %724 = vmatpush2.bf16.msra.mxu0 0
    %725 = vmatprep.subr.bf16.mxu0 0
    %726 = vmatpush2.bf16.msra.mxu0 0
    %727 = vmatprep.subr.bf16.mxu0 0
    %728 = vmatpush2.bf16.msra.mxu0 0
    %729 = vmatprep.subr.bf16.mxu0 0
    %730 = vmatpush2.bf16.msra.mxu0 0
    %731 = vmatprep.subr.bf16.mxu0 0
    %732 = vmatpush2.bf16.msra.mxu0 0
    %733 = vmatprep.subr.bf16.mxu0 0
    %734 = vmatpush2.bf16.msra.mxu0 0
    %735 = vmatprep.subr.bf16.mxu0 0
    %736 = vmatpush2.bf16.msra.mxu0 0
    %737 = vmatprep.subr.bf16.mxu0 0
    %738 = vmatpush2.bf16.msra.mxu0 0
    %739 = vmatprep.mubr.bf16.mxu0 0
    %740 = vmatmul.mubr.bf16.gmra.mxu0 %v254
    %v741 = vpop.f32.mrf.mxu0
    %v742 = vadd.f32 %v633, %v741
    %v743 = vpop.f32.mrf.mxu0
    %v744 = vpop.f32.mrf.mxu0
    %v745 = vadd.f32 %v636, %v744
    %v746 = vpop.f32.mrf.mxu0
    %747 = vmatprep.mubr.bf16.mxu0 0
    %748 = vmatmul.mubr.bf16.gmra.mxu0 %v257
    %v749 = vpop.f32.mrf.mxu0
    %v750 = vadd.f32 %v641, %v749
    %v751 = vpop.f32.mrf.mxu0
    %v752 = vpop.f32.mrf.mxu0
    %v753 = vadd.f32 %v644, %v752
    %v754 = vpop.f32.mrf.mxu0
    %755 = vmatprep.mubr.bf16.mxu0 0
    %756 = vmatmul.mubr.bf16.gmra.mxu0 %v260
    %v757 = vpop.f32.mrf.mxu0
    %v758 = vadd.f32 %v649, %v757
    %v759 = vpop.f32.mrf.mxu0
    %v760 = vpop.f32.mrf.mxu0
    %v761 = vadd.f32 %v652, %v760
    %v762 = vpop.f32.mrf.mxu0
    %763 = vmatprep.mubr.bf16.mxu0 0
    %764 = vmatmul.mubr.bf16.gmra.mxu0 %v263
    %v765 = vpop.f32.mrf.mxu0
    %v766 = vadd.f32 %v657, %v765
    %v767 = vpop.f32.mrf.mxu0
    %v768 = vpop.f32.mrf.mxu0
    %v769 = vadd.f32 %v660, %v768
    %v770 = vpop.f32.mrf.mxu0
    %771 = vmatprep.mubr.bf16.mxu0 0
    %772 = vmatmul.mubr.bf16.gmra.mxu0 %v266
    %v773 = vpop.f32.mrf.mxu0
    %v774 = vadd.f32 %v665, %v773
    %v775 = vpop.f32.mrf.mxu0
    %v776 = vpop.f32.mrf.mxu0
    %v777 = vadd.f32 %v668, %v776
    %v778 = vpop.f32.mrf.mxu0
    %779 = vmatprep.mubr.bf16.mxu0 0
    %780 = vmatmul.mubr.bf16.gmra.mxu0 %v269
    %v781 = vpop.f32.mrf.mxu0
    %v782 = vadd.f32 %v673, %v781
    %v783 = vpop.f32.mrf.mxu0
    %v784 = vpop.f32.mrf.mxu0
    %v785 = vadd.f32 %v676, %v784
    %v786 = vpop.f32.mrf.mxu0
    %787 = vmatprep.mubr.bf16.mxu0 0
    %788 = vmatmul.mubr.bf16.gmra.mxu0 %v272
    %v789 = vpop.f32.mrf.mxu0
    %v790 = vadd.f32 %v681, %v789
    %v791 = vpop.f32.mrf.mxu0
    %v792 = vpop.f32.mrf.mxu0
    %v793 = vadd.f32 %v684, %v792
    %v794 = vpop.f32.mrf.mxu0
    %795 = vmatprep.mubr.bf16.mxu0 0
    %796 = vmatmul.mubr.bf16.gmra.mxu0 %v275
    %v797 = vpop.f32.mrf.mxu0
    %v798 = vadd.f32 %v689, %v797
    %v799 = vpop.f32.mrf.mxu0
    %v800 = vpop.f32.mrf.mxu0
    %v801 = vadd.f32 %v692, %v800
    %v802 = vpop.f32.mrf.mxu0
    %803 = vdwg.mxu0
    %v804 = vld [vmem:[%s6] sm:$0xf]
    %v805 = vld [vmem:[%s6 + $0x4] sm:$0xf]
    %v806 = vld [vmem:[%s6 + $0x8] sm:$0xf]
    %v807 = vld [vmem:[%s6 + $0xc] sm:$0xf]
    %v824 = vunpack.c.l.b16 %v498
    %v825 = vunpack.c.l.b16 %v499
    %v826 = vunpack.c.l.b16 %v500
    %v827 = vunpack.c.l.b16 %v501
    %v828 = vunpack.c.l.b16 %v502
    %v829 = vunpack.c.l.b16 %v503
    %v830 = vunpack.c.l.b16 %v504
    %v831 = vunpack.c.l.b16 %v505
    %v832 = vunpack.c.l.b16 %v506
    %v833 = vunpack.c.l.b16 %v507
    %v834 = vunpack.c.l.b16 %v508
    %v835 = vunpack.c.l.b16 %v509
    %v836 = vunpack.c.l.b16 %v510
    %v837 = vunpack.c.l.b16 %v511
    %v838 = vunpack.c.l.b16 %v512
    %v839 = vunpack.c.l.b16 %v513
    %v840 = vpack.c.b16 %v825, %v824
    %v841 = vpack.c.b16 %v827, %v826
    %v842 = vpack.c.b16 %v829, %v828
    %v843 = vpack.c.b16 %v831, %v830
    %v844 = vpack.c.b16 %v833, %v832
    %v845 = vpack.c.b16 %v835, %v834
    %v846 = vpack.c.b16 %v837, %v836
    %v847 = vpack.c.b16 %v839, %v838
    %v852 = vunpack.c.l.b16 %v804
    %v853 = vunpack.c.l.b16 %v805
    %v854 = vunpack.c.l.b16 %v806
    %v855 = vunpack.c.l.b16 %v807
    %v856 = vpack.c.b16 %v853, %v852
    %v857 = vpack.c.b16 %v855, %v854
    %v861 = vsel %vm252, %v840, 0
    %v864 = vsel %vm252, %v841, 0
    %v867 = vsel %vm252, %v842, 0
    %v870 = vsel %vm252, %v843, 0
    %v873 = vsel %vm252, %v844, 0
    %v876 = vsel %vm252, %v845, 0
    %v879 = vsel %vm252, %v846, 0
    %v882 = vsel %vm252, %v847, 0
    %884 = vmatprep.subr.bf16.mxu0 0
    %885 = vmatpush1.bf16.msra.mxu0 0
    %886 = vmatprep.subr.bf16.mxu0 0
    %887 = vmatpush1.bf16.msra.mxu0 0
    %888 = vmatprep.subr.bf16.mxu0 0
    %889 = vmatpush1.bf16.msra.mxu0 0
    %890 = vmatprep.subr.bf16.mxu0 0
    %891 = vmatpush1.bf16.msra.mxu0 0
    %892 = vmatprep.subr.bf16.mxu0 0
    %893 = vmatpush1.bf16.msra.mxu0 0
    %894 = vmatprep.subr.bf16.mxu0 0
    %895 = vmatpush1.bf16.msra.mxu0 0
    %896 = vmatprep.subr.bf16.mxu0 0
    %897 = vmatpush1.bf16.msra.mxu0 %v857
    %898 = vmatprep.subr.bf16.mxu0 0
    %899 = vmatpush1.bf16.msra.mxu0 %v856
    %900 = vmatprep.subr.bf16.mxu0 0
    %901 = vmatpush2.bf16.msra.mxu0 0
    %902 = vmatprep.subr.bf16.mxu0 0
    %903 = vmatpush2.bf16.msra.mxu0 0
    %904 = vmatprep.subr.bf16.mxu0 0
    %905 = vmatpush2.bf16.msra.mxu0 0
    %906 = vmatprep.subr.bf16.mxu0 0
    %907 = vmatpush2.bf16.msra.mxu0 0
    %908 = vmatprep.subr.bf16.mxu0 0
    %909 = vmatpush2.bf16.msra.mxu0 0
    %910 = vmatprep.subr.bf16.mxu0 0
    %911 = vmatpush2.bf16.msra.mxu0 0
    %912 = vmatprep.subr.bf16.mxu0 0
    %913 = vmatpush2.bf16.msra.mxu0 0
    %914 = vmatprep.subr.bf16.mxu0 0
    %915 = vmatpush2.bf16.msra.mxu0 0
    %916 = vmatprep.mubr.bf16.mxu0 0
    %917 = vmatmul.mubr.bf16.gmra.mxu0 %v861
    %v918 = vpop.f32.mrf.mxu0
    %v919 = vadd.f32 0.0, %v918
    %v920 = vpop.f32.mrf.mxu0
    %v921 = vpop.f32.mrf.mxu0
    %v922 = vadd.f32 0.0, %v921
    %v923 = vpop.f32.mrf.mxu0
    %924 = vmatprep.mubr.bf16.mxu0 0
    %925 = vmatmul.mubr.bf16.gmra.mxu0 %v864
    %v926 = vpop.f32.mrf.mxu0
    %v927 = vadd.f32 0.0, %v926
    %v928 = vpop.f32.mrf.mxu0
    %v929 = vpop.f32.mrf.mxu0
    %v930 = vadd.f32 0.0, %v929
    %v931 = vpop.f32.mrf.mxu0
    %932 = vmatprep.mubr.bf16.mxu0 0
    %933 = vmatmul.mubr.bf16.gmra.mxu0 %v867
    %v934 = vpop.f32.mrf.mxu0
    %v935 = vadd.f32 0.0, %v934
    %v936 = vpop.f32.mrf.mxu0
    %v937 = vpop.f32.mrf.mxu0
    %v938 = vadd.f32 0.0, %v937
    %v939 = vpop.f32.mrf.mxu0
    %940 = vmatprep.mubr.bf16.mxu0 0
    %941 = vmatmul.mubr.bf16.gmra.mxu0 %v870
    %v942 = vpop.f32.mrf.mxu0
    %v943 = vadd.f32 0.0, %v942
    %v944 = vpop.f32.mrf.mxu0
    %v945 = vpop.f32.mrf.mxu0
    %v946 = vadd.f32 0.0, %v945
    %v947 = vpop.f32.mrf.mxu0
    %948 = vmatprep.mubr.bf16.mxu0 0
    %949 = vmatmul.mubr.bf16.gmra.mxu0 %v873
    %v950 = vpop.f32.mrf.mxu0
    %v951 = vadd.f32 0.0, %v950
    %v952 = vpop.f32.mrf.mxu0
    %v953 = vpop.f32.mrf.mxu0
    %v954 = vadd.f32 0.0, %v953
    %v955 = vpop.f32.mrf.mxu0
    %956 = vmatprep.mubr.bf16.mxu0 0
    %957 = vmatmul.mubr.bf16.gmra.mxu0 %v876
    %v958 = vpop.f32.mrf.mxu0
    %v959 = vadd.f32 0.0, %v958
    %v960 = vpop.f32.mrf.mxu0
    %v961 = vpop.f32.mrf.mxu0
    %v962 = vadd.f32 0.0, %v961
    %v963 = vpop.f32.mrf.mxu0
    %964 = vmatprep.mubr.bf16.mxu0 0
    %965 = vmatmul.mubr.bf16.gmra.mxu0 %v879
    %v966 = vpop.f32.mrf.mxu0
    %v967 = vadd.f32 0.0, %v966
    %v968 = vpop.f32.mrf.mxu0
    %v969 = vpop.f32.mrf.mxu0
    %v970 = vadd.f32 0.0, %v969
    %v971 = vpop.f32.mrf.mxu0
    %972 = vmatprep.mubr.bf16.mxu0 0
    %973 = vmatmul.mubr.bf16.gmra.mxu0 %v882
    %v974 = vpop.f32.mrf.mxu0
    %v975 = vadd.f32 0.0, %v974
    %v976 = vpop.f32.mrf.mxu0
    %v977 = vpop.f32.mrf.mxu0
    %v978 = vadd.f32 0.0, %v977
    %v979 = vpop.f32.mrf.mxu0
    %980 = vdwg.mxu0
    %v981 = vadd.f32 %v742, %v919
    %v982 = vadd.f32 %v745, %v922
    %v983 = vadd.f32 %v750, %v927
    %v984 = vadd.f32 %v753, %v930
    %v985 = vadd.f32 %v758, %v935
    %v986 = vadd.f32 %v761, %v938
    %v987 = vadd.f32 %v766, %v943
    %v988 = vadd.f32 %v769, %v946
    %v989 = vadd.f32 %v774, %v951
    %v990 = vadd.f32 %v777, %v954
    %v991 = vadd.f32 %v782, %v959
    %v992 = vadd.f32 %v785, %v962
    %v993 = vadd.f32 %v790, %v967
    %v994 = vadd.f32 %v793, %v970
    %v995 = vadd.f32 %v798, %v975
    %v996 = vadd.f32 %v801, %v978
    %v997 = vld [vmem:[%s7] sm:$0x1]
    %v999 = vlaneseq
    %v1000 = vshrl.u32 %v999, 7
    %v1001 = vsub.s32 0, %v1000
    %v1002 = vrot.slane %v997, %v1001
    %v1004 = vadd.f32 %v981, %v1002
    %v1005 = vadd.f32 %v982, %v1002
    %v1006 = vadd.f32 %v983, %v1002
    %v1007 = vadd.f32 %v984, %v1002
    %v1008 = vadd.f32 %v985, %v1002
    %v1009 = vadd.f32 %v986, %v1002
    %v1010 = vadd.f32 %v987, %v1002
    %v1011 = vadd.f32 %v988, %v1002
    %v1012 = vadd.f32 %v989, %v1002
    %v1013 = vadd.f32 %v990, %v1002
    %v1014 = vadd.f32 %v991, %v1002
    %v1015 = vadd.f32 %v992, %v1002
    %v1016 = vadd.f32 %v993, %v1002
    %v1017 = vadd.f32 %v994, %v1002
    %v1018 = vadd.f32 %v995, %v1002
    %v1019 = vadd.f32 %v996, %v1002
    %v1020 = vmax.f32 %v1004, 0.0
    %v1021 = vmax.f32 %v1005, 0.0
    %v1022 = vmax.f32 %v1006, 0.0
    %v1023 = vmax.f32 %v1007, 0.0
    %v1024 = vmax.f32 %v1008, 0.0
    %v1025 = vmax.f32 %v1009, 0.0
    %v1026 = vmax.f32 %v1010, 0.0
    %v1027 = vmax.f32 %v1011, 0.0
    %v1028 = vmax.f32 %v1012, 0.0
    %v1029 = vmax.f32 %v1013, 0.0
    %v1030 = vmax.f32 %v1014, 0.0
    %v1031 = vmax.f32 %v1015, 0.0
    %v1032 = vmax.f32 %v1016, 0.0
    %v1033 = vmax.f32 %v1017, 0.0
    %v1034 = vmax.f32 %v1018, 0.0
    %v1035 = vmax.f32 %v1019, 0.0
    %v1036 = vpack.c.bf16 %v1021, %v1020
    %v1037 = vpack.c.bf16 %v1023, %v1022
    %v1038 = vpack.c.bf16 %v1025, %v1024
    %v1039 = vpack.c.bf16 %v1027, %v1026
    %v1040 = vpack.c.bf16 %v1029, %v1028
    %v1041 = vpack.c.bf16 %v1031, %v1030
    %v1042 = vpack.c.bf16 %v1033, %v1032
    %v1043 = vpack.c.bf16 %v1035, %v1034
    %v1044 = vld [vmem:[%s8] sm:$0xf]
    %v1045 = vld [vmem:[%s8 + $0x4] sm:$0xf]
    %v1046 = vld [vmem:[%s8 + $0x8] sm:$0xf]
    %v1047 = vld [vmem:[%s8 + $0xc] sm:$0xf]
    %v1048 = vld [vmem:[%s8 + $0x10] sm:$0xf]
    %v1049 = vld [vmem:[%s8 + $0x14] sm:$0xf]
    %v1050 = vld [vmem:[%s8 + $0x18] sm:$0xf]
    %v1051 = vld [vmem:[%s8 + $0x1c] sm:$0xf]
    %v1052 = vld [vmem:[%s8 + $0x20] sm:$0xf]
    %v1053 = vld [vmem:[%s8 + $0x24] sm:$0xf]
    %v1054 = vld [vmem:[%s8 + $0x28] sm:$0xf]
    %v1055 = vld [vmem:[%s8 + $0x2c] sm:$0xf]
    %v1056 = vld [vmem:[%s8 + $0x30] sm:$0xf]
    %v1057 = vld [vmem:[%s8 + $0x34] sm:$0xf]
    %v1058 = vld [vmem:[%s8 + $0x38] sm:$0xf]
    %v1059 = vld [vmem:[%s8 + $0x3c] sm:$0xf]
    %v1060 = vld [vmem:[%s9] sm:$0x1]
    %v1062 = vlaneseq
    %v1063 = vshrl.u32 %v1062, 7
    %v1064 = vsub.s32 0, %v1063
    %v1065 = vrot.slane %v1060, %v1064
    %v1083 = vunpack.c.l.b16 %v1044
    %v1084 = vunpack.c.l.b16 %v1045
    %v1085 = vunpack.c.l.b16 %v1046
    %v1086 = vunpack.c.l.b16 %v1047
    %v1087 = vunpack.c.l.b16 %v1048
    %v1088 = vunpack.c.l.b16 %v1049
    %v1089 = vunpack.c.l.b16 %v1050
    %v1090 = vunpack.c.l.b16 %v1051
    %v1091 = vunpack.c.l.b16 %v1052
    %v1092 = vunpack.c.l.b16 %v1053
    %v1093 = vunpack.c.l.b16 %v1054
    %v1094 = vunpack.c.l.b16 %v1055
    %v1095 = vunpack.c.l.b16 %v1056
    %v1096 = vunpack.c.l.b16 %v1057
    %v1097 = vunpack.c.l.b16 %v1058
    %v1098 = vunpack.c.l.b16 %v1059
    %v1099 = vpack.c.b16 %v1084, %v1083
    %v1100 = vpack.c.b16 %v1086, %v1085
    %v1101 = vpack.c.b16 %v1088, %v1087
    %v1102 = vpack.c.b16 %v1090, %v1089
    %v1103 = vpack.c.b16 %v1092, %v1091
    %v1104 = vpack.c.b16 %v1094, %v1093
    %v1105 = vpack.c.b16 %v1096, %v1095
    %v1106 = vpack.c.b16 %v1098, %v1097
    %1115 = vmatprep.subr.bf16.mxu0 0
    %1116 = vmatpush1.bf16.msra.mxu0 %v1106
    %1117 = vmatprep.subr.bf16.mxu0 0
    %1118 = vmatpush1.bf16.msra.mxu0 %v1105
    %1119 = vmatprep.subr.bf16.mxu0 0
    %1120 = vmatpush1.bf16.msra.mxu0 %v1104
    %1121 = vmatprep.subr.bf16.mxu0 0
    %1122 = vmatpush1.bf16.msra.mxu0 %v1103
    %1123 = vmatprep.subr.bf16.mxu0 0
    %1124 = vmatpush1.bf16.msra.mxu0 %v1102
    %1125 = vmatprep.subr.bf16.mxu0 0
    %1126 = vmatpush1.bf16.msra.mxu0 %v1101
    %1127 = vmatprep.subr.bf16.mxu0 0
    %1128 = vmatpush1.bf16.msra.mxu0 %v1100
    %1129 = vmatprep.subr.bf16.mxu0 0
    %1130 = vmatpush1.bf16.msra.mxu0 %v1099
    %1131 = vmatprep.subr.bf16.mxu0 0
    %1132 = vmatpush2.bf16.msra.mxu0 0
    %1133 = vmatprep.subr.bf16.mxu0 0
    %1134 = vmatpush2.bf16.msra.mxu0 0
    %1135 = vmatprep.subr.bf16.mxu0 0
    %1136 = vmatpush2.bf16.msra.mxu0 0
    %1137 = vmatprep.subr.bf16.mxu0 0
    %1138 = vmatpush2.bf16.msra.mxu0 0
    %1139 = vmatprep.subr.bf16.mxu0 0
    %1140 = vmatpush2.bf16.msra.mxu0 0
    %1141 = vmatprep.subr.bf16.mxu0 0
    %1142 = vmatpush2.bf16.msra.mxu0 0
    %1143 = vmatprep.subr.bf16.mxu0 0
    %1144 = vmatpush2.bf16.msra.mxu0 0
    %1145 = vmatprep.subr.bf16.mxu0 0
    %1146 = vmatpush2.bf16.msra.mxu0 0
    %1147 = vmatprep.mubr.bf16.mxu0 0
    %1148 = vmatmul.mubr.bf16.gmra.mxu0 %v1036
    %v1149 = vpop.f32.mrf.mxu0
    %v1150 = vadd.f32 %v1065, %v1149
    %v1151 = vpop.f32.mrf.mxu0
    %v1152 = vpop.f32.mrf.mxu0
    %v1153 = vadd.f32 %v1065, %v1152
    %v1154 = vpop.f32.mrf.mxu0
    %1155 = vmatprep.mubr.bf16.mxu0 0
    %1156 = vmatmul.mubr.bf16.gmra.mxu0 %v1037
    %v1157 = vpop.f32.mrf.mxu0
    %v1158 = vadd.f32 %v1065, %v1157
    %v1159 = vpop.f32.mrf.mxu0
    %v1160 = vpop.f32.mrf.mxu0
    %v1161 = vadd.f32 %v1065, %v1160
    %v1162 = vpop.f32.mrf.mxu0
    %1163 = vmatprep.mubr.bf16.mxu0 0
    %1164 = vmatmul.mubr.bf16.gmra.mxu0 %v1038
    %v1165 = vpop.f32.mrf.mxu0
    %v1166 = vadd.f32 %v1065, %v1165
    %v1167 = vpop.f32.mrf.mxu0
    %v1168 = vpop.f32.mrf.mxu0
    %v1169 = vadd.f32 %v1065, %v1168
    %v1170 = vpop.f32.mrf.mxu0
    %1171 = vmatprep.mubr.bf16.mxu0 0
    %1172 = vmatmul.mubr.bf16.gmra.mxu0 %v1039
    %v1173 = vpop.f32.mrf.mxu0
    %v1174 = vadd.f32 %v1065, %v1173
    %v1175 = vpop.f32.mrf.mxu0
    %v1176 = vpop.f32.mrf.mxu0
    %v1177 = vadd.f32 %v1065, %v1176
    %v1178 = vpop.f32.mrf.mxu0
    %1179 = vmatprep.mubr.bf16.mxu0 0
    %1180 = vmatmul.mubr.bf16.gmra.mxu0 %v1040
    %v1181 = vpop.f32.mrf.mxu0
    %v1182 = vadd.f32 %v1065, %v1181
    %v1183 = vpop.f32.mrf.mxu0
    %v1184 = vpop.f32.mrf.mxu0
    %v1185 = vadd.f32 %v1065, %v1184
    %v1186 = vpop.f32.mrf.mxu0
    %1187 = vmatprep.mubr.bf16.mxu0 0
    %1188 = vmatmul.mubr.bf16.gmra.mxu0 %v1041
    %v1189 = vpop.f32.mrf.mxu0
    %v1190 = vadd.f32 %v1065, %v1189
    %v1191 = vpop.f32.mrf.mxu0
    %v1192 = vpop.f32.mrf.mxu0
    %v1193 = vadd.f32 %v1065, %v1192
    %v1194 = vpop.f32.mrf.mxu0
    %1195 = vmatprep.mubr.bf16.mxu0 0
    %1196 = vmatmul.mubr.bf16.gmra.mxu0 %v1042
    %v1197 = vpop.f32.mrf.mxu0
    %v1198 = vadd.f32 %v1065, %v1197
    %v1199 = vpop.f32.mrf.mxu0
    %v1200 = vpop.f32.mrf.mxu0
    %v1201 = vadd.f32 %v1065, %v1200
    %v1202 = vpop.f32.mrf.mxu0
    %1203 = vmatprep.mubr.bf16.mxu0 0
    %1204 = vmatmul.mubr.bf16.gmra.mxu0 %v1043
    %v1205 = vpop.f32.mrf.mxu0
    %v1206 = vadd.f32 %v1065, %v1205
    %v1207 = vpop.f32.mrf.mxu0
    %v1208 = vpop.f32.mrf.mxu0
    %v1209 = vadd.f32 %v1065, %v1208
    %v1210 = vpop.f32.mrf.mxu0
    %1211 = vdwg.mxu0
    %v1212 = vmax.f32 %v1150, 0.0
    %v1213 = vmax.f32 %v1153, 0.0
    %v1214 = vmax.f32 %v1158, 0.0
    %v1215 = vmax.f32 %v1161, 0.0
    %v1216 = vmax.f32 %v1166, 0.0
    %v1217 = vmax.f32 %v1169, 0.0
    %v1218 = vmax.f32 %v1174, 0.0
    %v1219 = vmax.f32 %v1177, 0.0
    %v1220 = vmax.f32 %v1182, 0.0
    %v1221 = vmax.f32 %v1185, 0.0
    %v1222 = vmax.f32 %v1190, 0.0
    %v1223 = vmax.f32 %v1193, 0.0
    %v1224 = vmax.f32 %v1198, 0.0
    %v1225 = vmax.f32 %v1201, 0.0
    %v1226 = vmax.f32 %v1206, 0.0
    %v1227 = vmax.f32 %v1209, 0.0
    %v1228 = vpack.c.bf16 %v1213, %v1212
    %v1229 = vpack.c.bf16 %v1215, %v1214
    %v1230 = vpack.c.bf16 %v1217, %v1216
    %v1231 = vpack.c.bf16 %v1219, %v1218
    %v1232 = vpack.c.bf16 %v1221, %v1220
    %v1233 = vpack.c.bf16 %v1223, %v1222
    %v1234 = vpack.c.bf16 %v1225, %v1224
    %v1235 = vpack.c.bf16 %v1227, %v1226
    %v1236 = vld [vmem:[%s10] sm:$0xf]
    %v1237 = vld [vmem:[%s10 + $0x4] sm:$0xf]
    %v1238 = vld [vmem:[%s10 + $0x8] sm:$0xf]
    %v1239 = vld [vmem:[%s10 + $0xc] sm:$0xf]
    %v1240 = vld [vmem:[%s10 + $0x10] sm:$0xf]
    %v1241 = vld [vmem:[%s10 + $0x14] sm:$0xf]
    %v1242 = vld [vmem:[%s10 + $0x18] sm:$0xf]
    %v1243 = vld [vmem:[%s10 + $0x1c] sm:$0xf]
    %v1244 = vld [vmem:[%s10 + $0x20] sm:$0xf]
    %v1245 = vld [vmem:[%s10 + $0x24] sm:$0xf]
    %v1246 = vld [vmem:[%s10 + $0x28] sm:$0xf]
    %v1247 = vld [vmem:[%s10 + $0x2c] sm:$0xf]
    %v1248 = vld [vmem:[%s10 + $0x30] sm:$0xf]
    %v1249 = vld [vmem:[%s10 + $0x34] sm:$0xf]
    %v1250 = vld [vmem:[%s10 + $0x38] sm:$0xf]
    %v1251 = vld [vmem:[%s10 + $0x3c] sm:$0xf]
    %v1252 = vld [vmem:[%s11] sm:$0x1]
    %v1254 = vlaneseq
    %v1255 = vshrl.u32 %v1254, 7
    %v1256 = vsub.s32 0, %v1255
    %v1257 = vrot.slane %v1252, %v1256
    %v1275 = vunpack.c.l.b16 %v1236
    %v1276 = vunpack.c.l.b16 %v1237
    %v1277 = vunpack.c.l.b16 %v1238
    %v1278 = vunpack.c.l.b16 %v1239
    %v1279 = vunpack.c.l.b16 %v1240
    %v1280 = vunpack.c.l.b16 %v1241
    %v1281 = vunpack.c.l.b16 %v1242
    %v1282 = vunpack.c.l.b16 %v1243
    %v1283 = vunpack.c.l.b16 %v1244
    %v1284 = vunpack.c.l.b16 %v1245
    %v1285 = vunpack.c.l.b16 %v1246
    %v1286 = vunpack.c.l.b16 %v1247
    %v1287 = vunpack.c.l.b16 %v1248
    %v1288 = vunpack.c.l.b16 %v1249
    %v1289 = vunpack.c.l.b16 %v1250
    %v1290 = vunpack.c.l.b16 %v1251
    %v1291 = vpack.c.b16 %v1276, %v1275
    %v1292 = vpack.c.b16 %v1278, %v1277
    %v1293 = vpack.c.b16 %v1280, %v1279
    %v1294 = vpack.c.b16 %v1282, %v1281
    %v1295 = vpack.c.b16 %v1284, %v1283
    %v1296 = vpack.c.b16 %v1286, %v1285
    %v1297 = vpack.c.b16 %v1288, %v1287
    %v1298 = vpack.c.b16 %v1290, %v1289
    %1307 = vmatprep.subr.bf16.mxu0 0
    %1308 = vmatpush1.bf16.msra.mxu0 %v1298
    %1309 = vmatprep.subr.bf16.mxu0 0
    %1310 = vmatpush1.bf16.msra.mxu0 %v1297
    %1311 = vmatprep.subr.bf16.mxu0 0
    %1312 = vmatpush1.bf16.msra.mxu0 %v1296
    %1313 = vmatprep.subr.bf16.mxu0 0
    %1314 = vmatpush1.bf16.msra.mxu0 %v1295
    %1315 = vmatprep.subr.bf16.mxu0 0
    %1316 = vmatpush1.bf16.msra.mxu0 %v1294
    %1317 = vmatprep.subr.bf16.mxu0 0
    %1318 = vmatpush1.bf16.msra.mxu0 %v1293
    %1319 = vmatprep.subr.bf16.mxu0 0
    %1320 = vmatpush1.bf16.msra.mxu0 %v1292
    %1321 = vmatprep.subr.bf16.mxu0 0
    %1322 = vmatpush1.bf16.msra.mxu0 %v1291
    %1323 = vmatprep.subr.bf16.mxu0 0
    %1324 = vmatpush2.bf16.msra.mxu0 0
    %1325 = vmatprep.subr.bf16.mxu0 0
    %1326 = vmatpush2.bf16.msra.mxu0 0
    %1327 = vmatprep.subr.bf16.mxu0 0
    %1328 = vmatpush2.bf16.msra.mxu0 0
    %1329 = vmatprep.subr.bf16.mxu0 0
    %1330 = vmatpush2.bf16.msra.mxu0 0
    %1331 = vmatprep.subr.bf16.mxu0 0
    %1332 = vmatpush2.bf16.msra.mxu0 0
    %1333 = vmatprep.subr.bf16.mxu0 0
    %1334 = vmatpush2.bf16.msra.mxu0 0
    %1335 = vmatprep.subr.bf16.mxu0 0
    %1336 = vmatpush2.bf16.msra.mxu0 0
    %1337 = vmatprep.subr.bf16.mxu0 0
    %1338 = vmatpush2.bf16.msra.mxu0 0
    %1339 = vmatprep.mubr.bf16.mxu0 0
    %1340 = vmatmul.mubr.bf16.gmra.mxu0 %v1228
    %v1341 = vpop.f32.mrf.mxu0
    %v1342 = vadd.f32 %v1257, %v1341
    %v1343 = vpop.f32.mrf.mxu0
    %v1344 = vpop.f32.mrf.mxu0
    %v1345 = vadd.f32 %v1257, %v1344
    %v1346 = vpop.f32.mrf.mxu0
    %1347 = vmatprep.mubr.bf16.mxu0 0
    %1348 = vmatmul.mubr.bf16.gmra.mxu0 %v1229
    %v1349 = vpop.f32.mrf.mxu0
    %v1350 = vadd.f32 %v1257, %v1349
    %v1351 = vpop.f32.mrf.mxu0
    %v1352 = vpop.f32.mrf.mxu0
    %v1353 = vadd.f32 %v1257, %v1352
    %v1354 = vpop.f32.mrf.mxu0
    %1355 = vmatprep.mubr.bf16.mxu0 0
    %1356 = vmatmul.mubr.bf16.gmra.mxu0 %v1230
    %v1357 = vpop.f32.mrf.mxu0
    %v1358 = vadd.f32 %v1257, %v1357
    %v1359 = vpop.f32.mrf.mxu0
    %v1360 = vpop.f32.mrf.mxu0
    %v1361 = vadd.f32 %v1257, %v1360
    %v1362 = vpop.f32.mrf.mxu0
    %1363 = vmatprep.mubr.bf16.mxu0 0
    %1364 = vmatmul.mubr.bf16.gmra.mxu0 %v1231
    %v1365 = vpop.f32.mrf.mxu0
    %v1366 = vadd.f32 %v1257, %v1365
    %v1367 = vpop.f32.mrf.mxu0
    %v1368 = vpop.f32.mrf.mxu0
    %v1369 = vadd.f32 %v1257, %v1368
    %v1370 = vpop.f32.mrf.mxu0
    %1371 = vmatprep.mubr.bf16.mxu0 0
    %1372 = vmatmul.mubr.bf16.gmra.mxu0 %v1232
    %v1373 = vpop.f32.mrf.mxu0
    %v1374 = vadd.f32 %v1257, %v1373
    %v1375 = vpop.f32.mrf.mxu0
    %v1376 = vpop.f32.mrf.mxu0
    %v1377 = vadd.f32 %v1257, %v1376
    %v1378 = vpop.f32.mrf.mxu0
    %1379 = vmatprep.mubr.bf16.mxu0 0
    %1380 = vmatmul.mubr.bf16.gmra.mxu0 %v1233
    %v1381 = vpop.f32.mrf.mxu0
    %v1382 = vadd.f32 %v1257, %v1381
    %v1383 = vpop.f32.mrf.mxu0
    %v1384 = vpop.f32.mrf.mxu0
    %v1385 = vadd.f32 %v1257, %v1384
    %v1386 = vpop.f32.mrf.mxu0
    %1387 = vmatprep.mubr.bf16.mxu0 0
    %1388 = vmatmul.mubr.bf16.gmra.mxu0 %v1234
    %v1389 = vpop.f32.mrf.mxu0
    %v1390 = vadd.f32 %v1257, %v1389
    %v1391 = vpop.f32.mrf.mxu0
    %v1392 = vpop.f32.mrf.mxu0
    %v1393 = vadd.f32 %v1257, %v1392
    %v1394 = vpop.f32.mrf.mxu0
    %1395 = vmatprep.mubr.bf16.mxu0 0
    %1396 = vmatmul.mubr.bf16.gmra.mxu0 %v1235
    %v1397 = vpop.f32.mrf.mxu0
    %v1398 = vadd.f32 %v1257, %v1397
    %v1399 = vpop.f32.mrf.mxu0
    %v1400 = vpop.f32.mrf.mxu0
    %v1401 = vadd.f32 %v1257, %v1400
    %v1402 = vpop.f32.mrf.mxu0
    %1403 = vdwg.mxu0
    %1404 = vst [vmem:[%s13] sm:$0xff] %v1342
    %1405 = vst [vmem:[%s13 + $0x8] sm:$0xff] %v1345
    %1406 = vst [vmem:[%s13 + $0x10] sm:$0xff] %v1350
    %1407 = vst [vmem:[%s13 + $0x18] sm:$0xff] %v1353
    %1408 = vst [vmem:[%s13 + $0x20] sm:$0xff] %v1358
    %1409 = vst [vmem:[%s13 + $0x28] sm:$0xff] %v1361
    %1410 = vst [vmem:[%s13 + $0x30] sm:$0xff] %v1366
    %1411 = vst [vmem:[%s13 + $0x38] sm:$0xff] %v1369
    %1412 = vst [vmem:[%s13 + $0x40] sm:$0xff] %v1374
    %1413 = vst [vmem:[%s13 + $0x48] sm:$0xff] %v1377
    %1414 = vst [vmem:[%s13 + $0x50] sm:$0xff] %v1382
    %1415 = vst [vmem:[%s13 + $0x58] sm:$0xff] %v1385
    %1416 = vst [vmem:[%s13 + $0x60] sm:$0xff] %v1390
    %1417 = vst [vmem:[%s13 + $0x68] sm:$0xff] %v1393
    %1418 = vst [vmem:[%s13 + $0x70] sm:$0xff] %v1398
    %1419 = vst [vmem:[%s13 + $0x78] sm:$0xff] %v1401
  $region53: #{multitask_forward.1} parent=0 // pred_fallthru
    _
  // Predicated region
  $region54: #{multitask_forward.1} parent=0 // pred_check
    _
  $region55: #{multitask_forward.1} parent=0 // pred_check_branch
    %1421 = sbr.rel (0) target = $region57
  $region56: #{multitask_forward.1} parent=0 // pred_region
    _
  $region57: #{multitask_forward.1} parent=0 // pred_fallthru
    _
  // Predicated region
  $region58: #{multitask_forward.1} parent=0 // pred_check
    _
  $region59: #{multitask_forward.1} parent=0 // pred_check_branch
    %1423 = sbr.rel (0) target = $region61
  $region60: #{multitask_forward.1} parent=0 // pred_region
    _
  $region61: #{multitask_forward.1} parent=0 // pred_fallthru
    _
  // Predicated region
  $region62: #{multitask_forward.1} parent=0 // pred_check
    _
  $region63: #{multitask_forward.1} parent=0 // pred_check_branch
    %1425 = sbr.rel (0) target = $region65
  $region64: #{multitask_forward.1} parent=0 // pred_region
    _
  $region65: #{multitask_forward.1} parent=0 // pred_fallthru
    _
  // Predicated region
  $region66: #{multitask_forward.1} parent=0 // pred_check
    _
  $region67: #{multitask_forward.1} parent=0 // pred_check_branch
    %1427 = sbr.rel (0) target = $region69
  $region68: #{multitask_forward.1} parent=0 // pred_region
    _
  $region69: #{multitask_forward.1} parent=0 // pred_fallthru
    _

</llo_original>
